<compile_context>
chip_gen: v6e
topology: v6e:2x2x1
jax: 0.10.0
libtpu: 0.0.40
codegen_flags: <defaults>
</compile_context>

<pallas_src>
import math

import jax
import jax.numpy as jnp
from jax import lax
from jax.experimental import pallas as pl
from jax.experimental.pallas import tpu as pltpu


def _transe_kernel(src_ref, dst_ref, typ_ref, zt_ref, relt_ref, out_ref):
    zt = zt_ref[...]          # [H, N]  f32  node embeddings (transposed)
    relt = relt_ref[...]      # [H, R]  f32  relation embeddings (transposed)
    n_nodes = zt.shape[1]
    n_rel = relt.shape[1]
    tile_e = out_ref.shape[1]

    src = src_ref[...]        # [1, TILE_E] int32
    dst = dst_ref[...]        # [1, TILE_E] int32
    typ = typ_ref[...]        # [1, TILE_E] int32

    # One-hot row-gather on the MXU (edges on the lane axis).
    node_ids = lax.broadcasted_iota(jnp.int32, (n_nodes, tile_e), 0)
    rel_ids = lax.broadcasted_iota(jnp.int32, (n_rel, tile_e), 0)
    oh_src = (node_ids == src).astype(jnp.float32)   # [N, TILE_E]
    oh_dst = (node_ids == dst).astype(jnp.float32)   # [N, TILE_E]
    oh_typ = (rel_ids == typ).astype(jnp.float32)    # [R, TILE_E]

    hi = lax.Precision.HIGHEST  # exact f32 gather through the MXU
    head = jnp.dot(zt, oh_src, preferred_element_type=jnp.float32, precision=hi)
    tail = jnp.dot(zt, oh_dst, preferred_element_type=jnp.float32, precision=hi)
    rel = jnp.dot(relt, oh_typ, preferred_element_type=jnp.float32, precision=hi)

    # F.normalize(x, p=1, dim=-1) = x / max(sum(|x|), eps); one reciprocal per
    # edge, applied as a broadcast multiply over H.
    eps = jnp.float32(1e-12)
    h_norm = jnp.maximum(jnp.sum(jnp.abs(head), axis=0, keepdims=True), eps)
    t_norm = jnp.maximum(jnp.sum(jnp.abs(tail), axis=0, keepdims=True), eps)
    # approx=True would move this onto the EUP, but exact keeps f32 parity with
    # the reference; the per-edge cost is negligible either way.
    inv_h = pl.reciprocal(h_norm, approx=False)      # [1, TILE_E]
    inv_t = pl.reciprocal(t_norm, approx=False)      # [1, TILE_E]

    diff = head * inv_h + rel - tail * inv_t         # [H, TILE_E]
    # score = -||h + rel - t||_1 ; lane-dense (1, TILE_E) output block.
    out_ref[...] = -jnp.sum(jnp.abs(diff), axis=0, keepdims=True)


def _round_up(x, m):
    return ((x + m - 1) // m) * m


def transe_forward(z, edge_index, edge_type, rel_emb, *, tile_e=512):
    """TransE.forward(z, edge_index, edge_type) -> scores of shape [E]."""
    num_nodes, hidden = z.shape
    num_rel = rel_emb.shape[0]
    num_edges = edge_index.shape[1]

    # Lane-dense edge tiles: multiple of 128, shrunk for tiny problems.  Keep
    # tile_e * (H + num_nodes + num_rel) * 4 B * 2 buffers under the per-chip
    # VMEM budget (v7x: 64 MiB physical / 32 MiB default scoped).
    tile_e = max(128, min(_round_up(tile_e, 128), _round_up(num_edges, 128)))
    e_pad = _round_up(num_edges, tile_e)
    pad = e_pad - num_edges

    src = jnp.pad(edge_index[0].astype(jnp.int32), (0, pad)).reshape(1, e_pad)
    dst = jnp.pad(edge_index[1].astype(jnp.int32), (0, pad)).reshape(1, e_pad)
    typ = jnp.pad(edge_type.astype(jnp.int32), (0, pad)).reshape(1, e_pad)

    z_t = z.astype(jnp.float32).T          # [H, N] — edges-on-lanes layout
    rel_t = rel_emb.astype(jnp.float32).T  # [H, R]

    edge_spec = pl.BlockSpec((1, tile_e), lambda i: (0, i))

    out = pl.pallas_call(
        _transe_kernel,
        out_shape=jax.ShapeDtypeStruct((1, e_pad), jnp.float32),
        grid=(e_pad // tile_e,),
        in_specs=[
            edge_spec,                                            # src indices
            edge_spec,                                            # dst indices
            edge_spec,                                            # edge type
            pl.BlockSpec((hidden, num_nodes), lambda i: (0, 0)),  # z^T (VMEM-resident)
            pl.BlockSpec((hidden, num_rel), lambda i: (0, 0)),    # rel_emb^T (VMEM-resident)
        ],
        out_specs=edge_spec,
        compiler_params=pltpu.CompilerParams(
            dimension_semantics=("parallel",),
        ),
    )(src, dst, typ, z_t, rel_t)

    return out[0, :num_edges]


def init_rel_emb(key, num_relations, hidden_channels):
    """Deterministic re-implementation of TransE.reset_parameters (plain JAX)."""
    bound = 6.0 / math.sqrt(hidden_channels)
    rel = jax.random.uniform(
        key, (num_relations, hidden_channels),
        minval=-bound, maxval=bound, dtype=jnp.float32)
    l2 = jnp.maximum(jnp.linalg.norm(rel, axis=-1, keepdims=True), 1e-12)
    return rel / l2


if __name__ == "__main__":
    key = jax.random.PRNGKey(0)
    k_z, k_rel, k_src, k_dst, k_type = jax.random.split(key, 5)

    num_nodes = 12
    num_relations = 5
    hidden_channels = 32
    num_edges = 16

    z = jax.random.normal(k_z, (num_nodes, hidden_channels), dtype=jnp.float32)
    rel_emb = init_rel_emb(k_rel, num_relations, hidden_channels)

    src = jax.random.randint(k_src, (num_edges,), 0, num_nodes)
    dst = jax.random.randint(k_dst, (num_edges,), 0, num_nodes)
    edge_index = jnp.stack([src, dst], axis=0)                              # [2, E]
    edge_type = jax.random.randint(k_type, (num_edges,), 0, num_relations)  # [E]

    scores = transe_forward(z, edge_index, edge_type, rel_emb)
    jax.block_until_ready(scores)

    # Pure-JAX reference check (exact TransE semantics).
    head = z[edge_index[0]]
    tail = z[edge_index[1]]
    rel = rel_emb[edge_type]
    h = head / jnp.maximum(jnp.sum(jnp.abs(head), -1, keepdims=True), 1e-12)
    t = tail / jnp.maximum(jnp.sum(jnp.abs(tail), -1, keepdims=True), 1e-12)
    ref = -jnp.sum(jnp.abs(h + rel - t), axis=-1)

    assert scores.shape == (num_edges,)
    assert jnp.allclose(scores, ref, atol=1e-4, rtol=1e-4), (
        float(jnp.max(jnp.abs(scores - ref))))

    print("KERNEL_OK")
</pallas_src>

<mosaic_0001>
module attributes {stable_mosaic.version = 11 : i64} {
  func.func @_transe_kernel(%arg0: i32, %arg1: memref<1x128xi32, #tpu.memory_space<vmem>>, %arg2: memref<1x128xi32, #tpu.memory_space<vmem>>, %arg3: memref<1x128xi32, #tpu.memory_space<vmem>>, %arg4: memref<32x12xf32, #tpu.memory_space<vmem>>, %arg5: memref<32x5xf32, #tpu.memory_space<vmem>>, %arg6: memref<1x128xf32, #tpu.memory_space<vmem>>) attributes {dimension_semantics = [#tpu.dimension_semantics<parallel>], iteration_bounds = array<i64: 1>, scalar_prefetch = 0 : i64, scratch_operands = 0 : i64, tpu.core_type = #tpu.core_type<tc>, window_params = [{transform_indices = @transform_0, window_bounds = array<i64: 1, 128>}, {transform_indices = @transform_1, window_bounds = array<i64: 1, 128>}, {transform_indices = @transform_2, window_bounds = array<i64: 1, 128>}, {pipeline_mode = #tpu.pipeline_mode<synchronous>, transform_indices = @transform_3, window_bounds = array<i64: 32, 12>}, {pipeline_mode = #tpu.pipeline_mode<synchronous>, transform_indices = @transform_4, window_bounds = array<i64: 32, 5>}, {transform_indices = @transform_5, window_bounds = array<i64: 1, 128>}]} {
    %c0 = arith.constant 0 : index
    %c0_0 = arith.constant 0 : index
    %0 = vector.load %arg4[%c0, %c0_0] : memref<32x12xf32, #tpu.memory_space<vmem>>, vector<32x12xf32>
    %c0_1 = arith.constant 0 : index
    %c0_2 = arith.constant 0 : index
    %1 = vector.load %arg5[%c0_1, %c0_2] : memref<32x5xf32, #tpu.memory_space<vmem>>, vector<32x5xf32>
    %c0_3 = arith.constant 0 : index
    %c0_4 = arith.constant 0 : index
    %2 = vector.load %arg1[%c0_3, %c0_4] : memref<1x128xi32, #tpu.memory_space<vmem>>, vector<1x128xi32>
    %c0_5 = arith.constant 0 : index
    %c0_6 = arith.constant 0 : index
    %3 = vector.load %arg2[%c0_5, %c0_6] : memref<1x128xi32, #tpu.memory_space<vmem>>, vector<1x128xi32>
    %c0_7 = arith.constant 0 : index
    %c0_8 = arith.constant 0 : index
    %4 = vector.load %arg3[%c0_7, %c0_8] : memref<1x128xi32, #tpu.memory_space<vmem>>, vector<1x128xi32>
    %5 = tpu.iota {dimensions = array<i32: 0>} : vector<12x128xi32>
    %6 = tpu.iota {dimensions = array<i32: 0>} : vector<5x128xi32>
    %7 = vector.broadcast %2 : vector<1x128xi32> to vector<12x128xi32>
    %8 = arith.cmpi eq, %5, %7 : vector<12x128xi32>
    %9 = arith.extui %8 : vector<12x128xi1> to vector<12x128xi32>
    %10 = arith.sitofp %9 : vector<12x128xi32> to vector<12x128xf32>
    %11 = vector.broadcast %3 : vector<1x128xi32> to vector<12x128xi32>
    %12 = arith.cmpi eq, %5, %11 : vector<12x128xi32>
    %13 = arith.extui %12 : vector<12x128xi1> to vector<12x128xi32>
    %14 = arith.sitofp %13 : vector<12x128xi32> to vector<12x128xf32>
    %15 = vector.broadcast %4 : vector<1x128xi32> to vector<5x128xi32>
    %16 = arith.cmpi eq, %6, %15 : vector<5x128xi32>
    %17 = arith.extui %16 : vector<5x128xi1> to vector<5x128xi32>
    %18 = arith.sitofp %17 : vector<5x128xi32> to vector<5x128xf32>
    %cst = arith.constant dense<0.000000e+00> : vector<32x128xf32>
    %19 = tpu.matmul %0, %10, %cst {dimension_numbers = #tpu.dot_dimension_numbers<[1], [0], [0], [1], [0, 0, 1, 1], [], []>, precision = #tpu.contract_precision<fp32>} : vector<32x12xf32>, vector<12x128xf32>, vector<32x128xf32> -> vector<32x128xf32>
    %cst_9 = arith.constant dense<0.000000e+00> : vector<32x128xf32>
    %20 = tpu.matmul %0, %14, %cst_9 {dimension_numbers = #tpu.dot_dimension_numbers<[1], [0], [0], [1], [0, 0, 1, 1], [], []>, precision = #tpu.contract_precision<fp32>} : vector<32x12xf32>, vector<12x128xf32>, vector<32x128xf32> -> vector<32x128xf32>
    %cst_10 = arith.constant dense<0.000000e+00> : vector<32x128xf32>
    %21 = tpu.matmul %1, %18, %cst_10 {dimension_numbers = #tpu.dot_dimension_numbers<[1], [0], [0], [1], [0, 0, 1, 1], [], []>, precision = #tpu.contract_precision<fp32>} : vector<32x5xf32>, vector<5x128xf32>, vector<32x128xf32> -> vector<32x128xf32>
    %22 = math.absf %19 : vector<32x128xf32>
    %cst_11 = arith.constant dense<0.000000e+00> : vector<128xf32>
    %23 = vector.multi_reduction <add>, %22, %cst_11 [0] : vector<32x128xf32> to vector<128xf32>
    %24 = vector.shape_cast %23 : vector<128xf32> to vector<1x128xf32>
    %cst_12 = arith.constant 9.99999996E-13 : f32
    %25 = vector.broadcast %cst_12 : f32 to vector<1x128xf32>
    %26 = arith.maximumf %24, %25 : vector<1x128xf32>
    %27 = math.absf %20 : vector<32x128xf32>
    %cst_13 = arith.constant dense<0.000000e+00> : vector<128xf32>
    %28 = vector.multi_reduction <add>, %27, %cst_13 [0] : vector<32x128xf32> to vector<128xf32>
    %29 = vector.shape_cast %28 : vector<128xf32> to vector<1x128xf32>
    %cst_14 = arith.constant 9.99999996E-13 : f32
    %30 = vector.broadcast %cst_14 : f32 to vector<1x128xf32>
    %31 = arith.maximumf %29, %30 : vector<1x128xf32>
    %32 = tpu.reciprocal %26 : vector<1x128xf32> -> vector<1x128xf32>
    %33 = tpu.reciprocal %31 : vector<1x128xf32> -> vector<1x128xf32>
    %34 = vector.broadcast %32 : vector<1x128xf32> to vector<32x128xf32>
    %35 = arith.mulf %19, %34 : vector<32x128xf32>
    %36 = arith.addf %35, %21 : vector<32x128xf32>
    %37 = vector.broadcast %33 : vector<1x128xf32> to vector<32x128xf32>
    %38 = arith.mulf %20, %37 : vector<32x128xf32>
    %39 = arith.subf %36, %38 : vector<32x128xf32>
    %40 = math.absf %39 : vector<32x128xf32>
    %cst_15 = arith.constant dense<0.000000e+00> : vector<128xf32>
    %41 = vector.multi_reduction <add>, %40, %cst_15 [0] : vector<32x128xf32> to vector<128xf32>
    %42 = vector.shape_cast %41 : vector<128xf32> to vector<1x128xf32>
    %cst_16 = arith.constant 0.000000e+00 : f32
    %43 = vector.broadcast %cst_16 : f32 to vector<1x128xf32>
    %44 = arith.subf %43, %42 : vector<1x128xf32>
    %c0_17 = arith.constant 0 : index
    %c0_18 = arith.constant 0 : index
    %45 = vector.load %arg6[%c0_17, %c0_18] : memref<1x128xf32, #tpu.memory_space<vmem>>, vector<1x128xf32>
    tpu.vector_store %arg6[%c0_17, %c0_18], %44 {strides = array<i32>} : memref<1x128xf32, #tpu.memory_space<vmem>>, vector<1x128xf32>,
    return
  }
  func.func @transform_0(%arg0: i32) -> (i32, i32) {
    %c0_i32 = arith.constant 0 : i32
    %c0_i32_0 = arith.constant 0 : i32
    return %c0_i32, %arg0 : i32, i32
  }
  func.func @transform_1(%arg0: i32) -> (i32, i32) {
    %c0_i32 = arith.constant 0 : i32
    %c0_i32_0 = arith.constant 0 : i32
    return %c0_i32, %arg0 : i32, i32
  }
  func.func @transform_2(%arg0: i32) -> (i32, i32) {
    %c0_i32 = arith.constant 0 : i32
    %c0_i32_0 = arith.constant 0 : i32
    return %c0_i32, %arg0 : i32, i32
  }
  func.func @transform_3(%arg0: i32) -> (i32, i32) {
    %c0_i32 = arith.constant 0 : i32
    %c0_i32_0 = arith.constant 0 : i32
    %c0_i32_1 = arith.constant 0 : i32
    return %c0_i32, %c0_i32_0 : i32, i32
  }
  func.func @transform_4(%arg0: i32) -> (i32, i32) {
    %c0_i32 = arith.constant 0 : i32
    %c0_i32_0 = arith.constant 0 : i32
    %c0_i32_1 = arith.constant 0 : i32
    return %c0_i32, %c0_i32_0 : i32, i32
  }
  func.func @transform_5(%arg0: i32) -> (i32, i32) {
    %c0_i32 = arith.constant 0 : i32
    %c0_i32_0 = arith.constant 0 : i32
    return %c0_i32, %arg0 : i32, i32
  }
}

</mosaic_0001>

<llo_original>
// kernel: tpu_custom_call.1
$region0: #{tpu_custom_call.1}
  #allocation0 [shape = 'u32[]', space=smem, size = 0x4, offset = 0x4, fixed_abs, tag = 'smem constant byte address 0x4 - core index']
  #allocation1 [shape = 'u32[144,128]{1,0:T(1,128)}', space=vmem, size = 0x12000, scoped, tag = 'internal scratch']
  %s0 = inlined_call_operand.vmem [shape: s32[1,128], index: 0, kind: input, shape index: {}]
  %s1 = inlined_call_operand.vmem [shape: s32[1,128], index: 1, kind: input, shape index: {}]
  %s2 = inlined_call_operand.vmem [shape: s32[1,128], index: 2, kind: input, shape index: {}]
  %s3 = inlined_call_operand.vmem [shape: f32[32,12], index: 3, kind: input, shape index: {}]
  %s4 = inlined_call_operand.vmem [shape: f32[32,5], index: 4, kind: input, shape index: {}]
  %s5 = inlined_call_operand.hbm [shape: f32[1,128], index: 5, kind: output, shape index: {}]
  %s6 = sld [smem:[#allocation0]]
  $region30: #{tpu_custom_call.1} parent=0
    _
  %s8 = ssub.s32 1, %s6
  %s9 = scalar_select 0, %s8, %s6
  $region1: #{tpu_custom_call.1} parent=0
    #allocation2 [shape = 'u8[512]{0}', space=vmem, size = 0x400, scoped, tag = 'output window, operand 0, single buffered']
    #allocation3 [shape = 's32[1]{0}', space=sflag, size = 0x4, scoped, tag = 'scoped memory for tpu_custom_call.1']
    %10 = vsyncpa [#allocation3], 0
    // Predicated region
    $region2: #{tpu_custom_call.1} parent=1 // pred_check
      _
    $region3: #{tpu_custom_call.1} parent=1 // pred_check_branch
      %12 = sbr.rel (0) target = $region5
    $region4: #{tpu_custom_call.1} parent=1 // pred_region
      _
    $region5: #{tpu_custom_call.1} parent=1 // pred_fallthru
      _
    // Predicated region
    $region6: #{tpu_custom_call.1} parent=1 // pred_check
      _
    $region7: #{tpu_custom_call.1} parent=1 // pred_check_branch
      %14 = sbr.rel (0) target = $region9
    $region8: #{tpu_custom_call.1} parent=1 // pred_region
      _
    $region9: #{tpu_custom_call.1} parent=1 // pred_fallthru
      _
    // Predicated region
    $region10: #{tpu_custom_call.1} parent=1 // pred_check
      _
    $region11: #{tpu_custom_call.1} parent=1 // pred_check_branch
      %16 = sbr.rel (0) target = $region13
    $region12: #{tpu_custom_call.1} parent=1 // pred_region
      _
    $region13: #{tpu_custom_call.1} parent=1 // pred_fallthru
      _
    // Predicated region
    $region14: #{tpu_custom_call.1} parent=1 // pred_check
      _
    $region15: #{tpu_custom_call.1} parent=1 // pred_check_branch
      %18 = sbr.rel (0) target = $region17
    $region16: #{tpu_custom_call.1} parent=1 // pred_region
      _
    $region17: #{tpu_custom_call.1} parent=1 // pred_fallthru
      _
    // Predicated region
    $region18: #{tpu_custom_call.1} parent=1 // pred_check
      _
    $region19: #{tpu_custom_call.1} parent=1 // pred_check_branch
      %20 = sbr.rel (0) target = $region21
    $region20: #{tpu_custom_call.1} parent=1 // pred_region
      _
    $region21: #{tpu_custom_call.1} parent=1 // pred_fallthru
      _
    %v21 = vld [vmem:[%s3] sm:$0xff]
    %v22 = vld [vmem:[%s3 + $0x8] sm:$0xff]
    %v23 = vld [vmem:[%s3 + $0x10] sm:$0xff]
    %v24 = vld [vmem:[%s3 + $0x18] sm:$0xff]
    %v25 = vld [vmem:[%s4] sm:$0xff]
    %v26 = vld [vmem:[%s4 + $0x8] sm:$0xff]
    %v27 = vld [vmem:[%s4 + $0x10] sm:$0xff]
    %v28 = vld [vmem:[%s4 + $0x18] sm:$0xff]
    %v29 = vld [vmem:[%s0] sm:$0x1]
    %v30 = vld [vmem:[%s1] sm:$0x1]
    %v31 = vld [vmem:[%s2] sm:$0x1]
    %v32 = vlaneseq
    %v33 = vshrl.u32 %v32, 7
    %v34 = vadd.s32 %v33, 8
    %v35 = vlaneseq
    %v36 = vshrl.u32 %v35, 7
    %v37 = vsub.s32 0, %v36
    %v38 = vrot.slane %v29, %v37
    %vm39 = vcmp.eq.s32.totalorder %v33, %v38
    %vm40 = vcmp.eq.s32.totalorder %v34, %v38
    %v41 = vsel %vm39, 1, 0
    %v42 = vsel %vm40, 1, 0
    %v43 = vcvt.s32.f32 %v41
    %v44 = vcvt.s32.f32 %v42
    %v45 = vlaneseq
    %v46 = vshrl.u32 %v45, 7
    %v47 = vsub.s32 0, %v46
    %v48 = vrot.slane %v30, %v47
    %vm49 = vcmp.eq.s32.totalorder %v33, %v48
    %vm50 = vcmp.eq.s32.totalorder %v34, %v48
    %v51 = vsel %vm49, 1, 0
    %v52 = vsel %vm50, 1, 0
    %v53 = vcvt.s32.f32 %v51
    %v54 = vcvt.s32.f32 %v52
    %v55 = vlaneseq
    %v56 = vshrl.u32 %v55, 7
    %v57 = vsub.s32 0, %v56
    %v58 = vrot.slane %v31, %v57
    %vm59 = vcmp.eq.s32.totalorder %v33, %v58
    %v60 = vsel %vm59, 1, 0
    %v61 = vcvt.s32.f32 %v60
    %vm62 = vcmask 97280
    %v64 = vsel %vm62, %v21, 0
    %v67 = vsel %vm62, %v22, 0
    %v70 = vsel %vm62, %v23, 0
    %v73 = vsel %vm62, %v24, 0
    %vm75 = vcmask 1043456
    %v77 = vsel %vm75, %v44, 0
    %79 = vmatprep.subr.mxu0 0.0
    %80 = vmatpush1.msra.mxu0 0.0
    %81 = vmatprep.subr.mxu0 0.0
    %82 = vmatpush1.msra.mxu0 0.0
    %83 = vmatprep.subr.mxu0 0.0
    %84 = vmatpush1.msra.mxu0 0.0
    %85 = vmatprep.subr.mxu0 0.0
    %86 = vmatpush1.msra.mxu0 0.0
    %87 = vmatprep.subr.mxu0 0.0
    %88 = vmatpush1.msra.mxu0 0.0
    %89 = vmatprep.subr.mxu0 0.0
    %90 = vmatpush1.msra.mxu0 0.0
    %91 = vmatprep.subr.mxu0 0.0
    %92 = vmatpush1.msra.mxu0 0.0
    %93 = vmatprep.subr.mxu0 0.0
    %94 = vmatpush1.msra.mxu0 0.0
    %95 = vmatprep.subr.mxu0 0.0
    %96 = vmatpush1.msra.mxu0 0.0
    %97 = vmatprep.subr.mxu0 0.0
    %98 = vmatpush1.msra.mxu0 0.0
    %99 = vmatprep.subr.mxu0 0.0
    %100 = vmatpush1.msra.mxu0 0.0
    %101 = vmatprep.subr.mxu0 0.0
    %102 = vmatpush1.msra.mxu0 0.0
    %103 = vmatprep.subr.mxu0 0.0
    %104 = vmatpush1.msra.mxu0 0.0
    %105 = vmatprep.subr.mxu0 0.0
    %106 = vmatpush1.msra.mxu0 0.0
    %107 = vmatprep.subr.mxu0 0.0
    %v108 = vand.u32 %v77, 4294901760
    %109 = vmatpush1.msra.mxu0 %v108
    %110 = vmatprep.subr.mxu0 0.0
    %v111 = vand.u32 %v43, 4294901760
    %112 = vmatpush1.msra.mxu0 %v111
    %113 = vmatprep.subr.mxu0 0.0
    %114 = vmatpush2.msra.mxu0 0.0
    %115 = vmatprep.subr.mxu0 0.0
    %116 = vmatpush2.msra.mxu0 0.0
    %117 = vmatprep.subr.mxu0 0.0
    %118 = vmatpush2.msra.mxu0 0.0
    %119 = vmatprep.subr.mxu0 0.0
    %120 = vmatpush2.msra.mxu0 0.0
    %121 = vmatprep.subr.mxu0 0.0
    %122 = vmatpush2.msra.mxu0 0.0
    %123 = vmatprep.subr.mxu0 0.0
    %124 = vmatpush2.msra.mxu0 0.0
    %125 = vmatprep.subr.mxu0 0.0
    %126 = vmatpush2.msra.mxu0 0.0
    %127 = vmatprep.subr.mxu0 0.0
    %128 = vmatpush2.msra.mxu0 0.0
    %129 = vmatprep.subr.mxu0 0.0
    %130 = vmatpush2.msra.mxu0 0.0
    %131 = vmatprep.subr.mxu0 0.0
    %132 = vmatpush2.msra.mxu0 0.0
    %133 = vmatprep.subr.mxu0 0.0
    %134 = vmatpush2.msra.mxu0 0.0
    %135 = vmatprep.subr.mxu0 0.0
    %136 = vmatpush2.msra.mxu0 0.0
    %137 = vmatprep.subr.mxu0 0.0
    %138 = vmatpush2.msra.mxu0 0.0
    %139 = vmatprep.subr.mxu0 0.0
    %140 = vmatpush2.msra.mxu0 0.0
    %141 = vmatprep.subr.mxu0 0.0
    %142 = vmatpush2.msra.mxu0 0.0
    %143 = vmatprep.subr.mxu0 0.0
    %144 = vmatpush2.msra.mxu0 0.0
    %145 = vmatprep.mubr.f32.mxu0 0.0
    %v146 = vand.u32 %v64, 4294901760
    %v147 = vsub.f32 %v64, %v146
    %v148 = vand.u32 %v147, 4294901760
    %v149 = vsub.f32 %v147, %v148
    %v150 = vand.u32 %v149, 4294901760
    %151 = vmatmul.mubr.f32.gmra.mxu0 %v150
    %v152 = vpop.f32.mrf.mxu0
    %v153 = vadd.f32 0.0, %v152
    %v154 = vpop.f32.mrf.mxu0
    %155 = vmatprep.mubr.f32.mxu0 0.0
    %v156 = vand.u32 %v67, 4294901760
    %v157 = vsub.f32 %v67, %v156
    %v158 = vand.u32 %v157, 4294901760
    %v159 = vsub.f32 %v157, %v158
    %v160 = vand.u32 %v159, 4294901760
    %161 = vmatmul.mubr.f32.gmra.mxu0 %v160
    %v162 = vpop.f32.mrf.mxu0
    %v163 = vadd.f32 0.0, %v162
    %v164 = vpop.f32.mrf.mxu0
    %165 = vmatprep.mubr.f32.mxu0 0.0
    %v166 = vand.u32 %v70, 4294901760
    %v167 = vsub.f32 %v70, %v166
    %v168 = vand.u32 %v167, 4294901760
    %v169 = vsub.f32 %v167, %v168
    %v170 = vand.u32 %v169, 4294901760
    %171 = vmatmul.mubr.f32.gmra.mxu0 %v170
    %v172 = vpop.f32.mrf.mxu0
    %v173 = vadd.f32 0.0, %v172
    %v174 = vpop.f32.mrf.mxu0
    %175 = vmatprep.mubr.f32.mxu0 0.0
    %v176 = vand.u32 %v73, 4294901760
    %v177 = vsub.f32 %v73, %v176
    %v178 = vand.u32 %v177, 4294901760
    %v179 = vsub.f32 %v177, %v178
    %v180 = vand.u32 %v179, 4294901760
    %181 = vmatmul.mubr.f32.gmra.mxu0 %v180
    %v182 = vpop.f32.mrf.mxu0
    %v183 = vadd.f32 0.0, %v182
    %v184 = vpop.f32.mrf.mxu0
    %185 = vdwg.mxu0
    %186 = vmatprep.subr.mxu0 0.0
    %187 = vmatpush1.msra.mxu0 0.0
    %188 = vmatprep.subr.mxu0 0.0
    %189 = vmatpush1.msra.mxu0 0.0
    %190 = vmatprep.subr.mxu0 0.0
    %191 = vmatpush1.msra.mxu0 0.0
    %192 = vmatprep.subr.mxu0 0.0
    %193 = vmatpush1.msra.mxu0 0.0
    %194 = vmatprep.subr.mxu0 0.0
    %195 = vmatpush1.msra.mxu0 0.0
    %196 = vmatprep.subr.mxu0 0.0
    %197 = vmatpush1.msra.mxu0 0.0
    %198 = vmatprep.subr.mxu0 0.0
    %199 = vmatpush1.msra.mxu0 0.0
    %200 = vmatprep.subr.mxu0 0.0
    %201 = vmatpush1.msra.mxu0 0.0
    %202 = vmatprep.subr.mxu0 0.0
    %203 = vmatpush1.msra.mxu0 0.0
    %204 = vmatprep.subr.mxu0 0.0
    %205 = vmatpush1.msra.mxu0 0.0
    %206 = vmatprep.subr.mxu0 0.0
    %207 = vmatpush1.msra.mxu0 0.0
    %208 = vmatprep.subr.mxu0 0.0
    %209 = vmatpush1.msra.mxu0 0.0
    %210 = vmatprep.subr.mxu0 0.0
    %211 = vmatpush1.msra.mxu0 0.0
    %212 = vmatprep.subr.mxu0 0.0
    %213 = vmatpush1.msra.mxu0 0.0
    %214 = vmatprep.subr.mxu0 0.0
    %v215 = vand.u32 %v77, 4294901760
    %v216 = vsub.f32 %v77, %v215
    %v217 = vand.u32 %v216, 4294901760
    %v218 = vsub.f32 %v216, %v217
    %v219 = vand.u32 %v218, 4294901760
    %220 = vmatpush1.msra.mxu0 %v219
    %221 = vmatprep.subr.mxu0 0.0
    %v222 = vand.u32 %v43, 4294901760
    %v223 = vsub.f32 %v43, %v222
    %v224 = vand.u32 %v223, 4294901760
    %v225 = vsub.f32 %v223, %v224
    %v226 = vand.u32 %v225, 4294901760
    %227 = vmatpush1.msra.mxu0 %v226
    %228 = vmatprep.subr.mxu0 0.0
    %229 = vmatpush2.msra.mxu0 0.0
    %230 = vmatprep.subr.mxu0 0.0
    %231 = vmatpush2.msra.mxu0 0.0
    %232 = vmatprep.subr.mxu0 0.0
    %233 = vmatpush2.msra.mxu0 0.0
    %234 = vmatprep.subr.mxu0 0.0
    %235 = vmatpush2.msra.mxu0 0.0
    %236 = vmatprep.subr.mxu0 0.0
    %237 = vmatpush2.msra.mxu0 0.0
    %238 = vmatprep.subr.mxu0 0.0
    %239 = vmatpush2.msra.mxu0 0.0
    %240 = vmatprep.subr.mxu0 0.0
    %241 = vmatpush2.msra.mxu0 0.0
    %242 = vmatprep.subr.mxu0 0.0
    %243 = vmatpush2.msra.mxu0 0.0
    %244 = vmatprep.subr.mxu0 0.0
    %245 = vmatpush2.msra.mxu0 0.0
    %246 = vmatprep.subr.mxu0 0.0
    %247 = vmatpush2.msra.mxu0 0.0
    %248 = vmatprep.subr.mxu0 0.0
    %249 = vmatpush2.msra.mxu0 0.0
    %250 = vmatprep.subr.mxu0 0.0
    %251 = vmatpush2.msra.mxu0 0.0
    %252 = vmatprep.subr.mxu0 0.0
    %253 = vmatpush2.msra.mxu0 0.0
    %254 = vmatprep.subr.mxu0 0.0
    %255 = vmatpush2.msra.mxu0 0.0
    %256 = vmatprep.subr.mxu0 0.0
    %257 = vmatpush2.msra.mxu0 0.0
    %258 = vmatprep.subr.mxu0 0.0
    %259 = vmatpush2.msra.mxu0 0.0
    %260 = vmatprep.mubr.f32.mxu0 0.0
    %v261 = vand.u32 %v64, 4294901760
    %262 = vmatmul.mubr.f32.gmra.mxu0 %v261
    %v263 = vpop.f32.mrf.mxu0
    %v264 = vadd.f32 %v153, %v263
    %v265 = vpop.f32.mrf.mxu0
    %266 = vmatprep.mubr.f32.mxu0 0.0
    %v267 = vand.u32 %v67, 4294901760
    %268 = vmatmul.mubr.f32.gmra.mxu0 %v267
    %v269 = vpop.f32.mrf.mxu0
    %v270 = vadd.f32 %v163, %v269
    %v271 = vpop.f32.mrf.mxu0
    %272 = vmatprep.mubr.f32.mxu0 0.0
    %v273 = vand.u32 %v70, 4294901760
    %274 = vmatmul.mubr.f32.gmra.mxu0 %v273
    %v275 = vpop.f32.mrf.mxu0
    %v276 = vadd.f32 %v173, %v275
    %v277 = vpop.f32.mrf.mxu0
    %278 = vmatprep.mubr.f32.mxu0 0.0
    %v279 = vand.u32 %v73, 4294901760
    %280 = vmatmul.mubr.f32.gmra.mxu0 %v279
    %v281 = vpop.f32.mrf.mxu0
    %v282 = vadd.f32 %v183, %v281
    %v283 = vpop.f32.mrf.mxu0
    %284 = vdwg.mxu0
    %285 = vmatprep.subr.mxu0 0.0
    %286 = vmatpush1.msra.mxu0 0.0
    %287 = vmatprep.subr.mxu0 0.0
    %288 = vmatpush1.msra.mxu0 0.0
    %289 = vmatprep.subr.mxu0 0.0
    %290 = vmatpush1.msra.mxu0 0.0
    %291 = vmatprep.subr.mxu0 0.0
    %292 = vmatpush1.msra.mxu0 0.0
    %293 = vmatprep.subr.mxu0 0.0
    %294 = vmatpush1.msra.mxu0 0.0
    %295 = vmatprep.subr.mxu0 0.0
    %296 = vmatpush1.msra.mxu0 0.0
    %297 = vmatprep.subr.mxu0 0.0
    %298 = vmatpush1.msra.mxu0 0.0
    %299 = vmatprep.subr.mxu0 0.0
    %300 = vmatpush1.msra.mxu0 0.0
    %301 = vmatprep.subr.mxu0 0.0
    %302 = vmatpush1.msra.mxu0 0.0
    %303 = vmatprep.subr.mxu0 0.0
    %304 = vmatpush1.msra.mxu0 0.0
    %305 = vmatprep.subr.mxu0 0.0
    %306 = vmatpush1.msra.mxu0 0.0
    %307 = vmatprep.subr.mxu0 0.0
    %308 = vmatpush1.msra.mxu0 0.0
    %309 = vmatprep.subr.mxu0 0.0
    %310 = vmatpush1.msra.mxu0 0.0
    %311 = vmatprep.subr.mxu0 0.0
    %312 = vmatpush1.msra.mxu0 0.0
    %313 = vmatprep.subr.mxu0 0.0
    %v314 = vand.u32 %v77, 4294901760
    %v315 = vsub.f32 %v77, %v314
    %316 = vmatpush1.msra.mxu0 %v315
    %317 = vmatprep.subr.mxu0 0.0
    %v318 = vand.u32 %v43, 4294901760
    %v319 = vsub.f32 %v43, %v318
    %320 = vmatpush1.msra.mxu0 %v319
    %321 = vmatprep.subr.mxu0 0.0
    %322 = vmatpush2.msra.mxu0 0.0
    %323 = vmatprep.subr.mxu0 0.0
    %324 = vmatpush2.msra.mxu0 0.0
    %325 = vmatprep.subr.mxu0 0.0
    %326 = vmatpush2.msra.mxu0 0.0
    %327 = vmatprep.subr.mxu0 0.0
    %328 = vmatpush2.msra.mxu0 0.0
    %329 = vmatprep.subr.mxu0 0.0
    %330 = vmatpush2.msra.mxu0 0.0
    %331 = vmatprep.subr.mxu0 0.0
    %332 = vmatpush2.msra.mxu0 0.0
    %333 = vmatprep.subr.mxu0 0.0
    %334 = vmatpush2.msra.mxu0 0.0
    %335 = vmatprep.subr.mxu0 0.0
    %336 = vmatpush2.msra.mxu0 0.0
    %337 = vmatprep.subr.mxu0 0.0
    %338 = vmatpush2.msra.mxu0 0.0
    %339 = vmatprep.subr.mxu0 0.0
    %340 = vmatpush2.msra.mxu0 0.0
    %341 = vmatprep.subr.mxu0 0.0
    %342 = vmatpush2.msra.mxu0 0.0
    %343 = vmatprep.subr.mxu0 0.0
    %344 = vmatpush2.msra.mxu0 0.0
    %345 = vmatprep.subr.mxu0 0.0
    %346 = vmatpush2.msra.mxu0 0.0
    %347 = vmatprep.subr.mxu0 0.0
    %348 = vmatpush2.msra.mxu0 0.0
    %349 = vmatprep.subr.mxu0 0.0
    %350 = vmatpush2.msra.mxu0 0.0
    %351 = vmatprep.subr.mxu0 0.0
    %352 = vmatpush2.msra.mxu0 0.0
    %353 = vmatprep.mubr.f32.mxu0 0.0
    %v354 = vand.u32 %v64, 4294901760
    %v355 = vsub.f32 %v64, %v354
    %356 = vmatmul.mubr.f32.gmra.mxu0 %v355
    %v357 = vpop.f32.mrf.mxu0
    %v358 = vadd.f32 %v264, %v357
    %v359 = vpop.f32.mrf.mxu0
    %360 = vmatprep.mubr.f32.mxu0 0.0
    %v361 = vand.u32 %v67, 4294901760
    %v362 = vsub.f32 %v67, %v361
    %363 = vmatmul.mubr.f32.gmra.mxu0 %v362
    %v364 = vpop.f32.mrf.mxu0
    %v365 = vadd.f32 %v270, %v364
    %v366 = vpop.f32.mrf.mxu0
    %367 = vmatprep.mubr.f32.mxu0 0.0
    %v368 = vand.u32 %v70, 4294901760
    %v369 = vsub.f32 %v70, %v368
    %370 = vmatmul.mubr.f32.gmra.mxu0 %v369
    %v371 = vpop.f32.mrf.mxu0
    %v372 = vadd.f32 %v276, %v371
    %v373 = vpop.f32.mrf.mxu0
    %374 = vmatprep.mubr.f32.mxu0 0.0
    %v375 = vand.u32 %v73, 4294901760
    %v376 = vsub.f32 %v73, %v375
    %377 = vmatmul.mubr.f32.gmra.mxu0 %v376
    %v378 = vpop.f32.mrf.mxu0
    %v379 = vadd.f32 %v282, %v378
    %v380 = vpop.f32.mrf.mxu0
    %381 = vdwg.mxu0
    %382 = vmatprep.subr.mxu0 0.0
    %383 = vmatpush1.msra.mxu0 0.0
    %384 = vmatprep.subr.mxu0 0.0
    %385 = vmatpush1.msra.mxu0 0.0
    %386 = vmatprep.subr.mxu0 0.0
    %387 = vmatpush1.msra.mxu0 0.0
    %388 = vmatprep.subr.mxu0 0.0
    %389 = vmatpush1.msra.mxu0 0.0
    %390 = vmatprep.subr.mxu0 0.0
    %391 = vmatpush1.msra.mxu0 0.0
    %392 = vmatprep.subr.mxu0 0.0
    %393 = vmatpush1.msra.mxu0 0.0
    %394 = vmatprep.subr.mxu0 0.0
    %395 = vmatpush1.msra.mxu0 0.0
    %396 = vmatprep.subr.mxu0 0.0
    %397 = vmatpush1.msra.mxu0 0.0
    %398 = vmatprep.subr.mxu0 0.0
    %399 = vmatpush1.msra.mxu0 0.0
    %400 = vmatprep.subr.mxu0 0.0
    %401 = vmatpush1.msra.mxu0 0.0
    %402 = vmatprep.subr.mxu0 0.0
    %403 = vmatpush1.msra.mxu0 0.0
    %404 = vmatprep.subr.mxu0 0.0
    %405 = vmatpush1.msra.mxu0 0.0
    %406 = vmatprep.subr.mxu0 0.0
    %407 = vmatpush1.msra.mxu0 0.0
    %408 = vmatprep.subr.mxu0 0.0
    %409 = vmatpush1.msra.mxu0 0.0
    %410 = vmatprep.subr.mxu0 0.0
    %v411 = vand.u32 %v77, 4294901760
    %412 = vmatpush1.msra.mxu0 %v411
    %413 = vmatprep.subr.mxu0 0.0
    %v414 = vand.u32 %v43, 4294901760
    %415 = vmatpush1.msra.mxu0 %v414
    %416 = vmatprep.subr.mxu0 0.0
    %417 = vmatpush2.msra.mxu0 0.0
    %418 = vmatprep.subr.mxu0 0.0
    %419 = vmatpush2.msra.mxu0 0.0
    %420 = vmatprep.subr.mxu0 0.0
    %421 = vmatpush2.msra.mxu0 0.0
    %422 = vmatprep.subr.mxu0 0.0
    %423 = vmatpush2.msra.mxu0 0.0
    %424 = vmatprep.subr.mxu0 0.0
    %425 = vmatpush2.msra.mxu0 0.0
    %426 = vmatprep.subr.mxu0 0.0
    %427 = vmatpush2.msra.mxu0 0.0
    %428 = vmatprep.subr.mxu0 0.0
    %429 = vmatpush2.msra.mxu0 0.0
    %430 = vmatprep.subr.mxu0 0.0
    %431 = vmatpush2.msra.mxu0 0.0
    %432 = vmatprep.subr.mxu0 0.0
    %433 = vmatpush2.msra.mxu0 0.0
    %434 = vmatprep.subr.mxu0 0.0
    %435 = vmatpush2.msra.mxu0 0.0
    %436 = vmatprep.subr.mxu0 0.0
    %437 = vmatpush2.msra.mxu0 0.0
    %438 = vmatprep.subr.mxu0 0.0
    %439 = vmatpush2.msra.mxu0 0.0
    %440 = vmatprep.subr.mxu0 0.0
    %441 = vmatpush2.msra.mxu0 0.0
    %442 = vmatprep.subr.mxu0 0.0
    %443 = vmatpush2.msra.mxu0 0.0
    %444 = vmatprep.subr.mxu0 0.0
    %445 = vmatpush2.msra.mxu0 0.0
    %446 = vmatprep.subr.mxu0 0.0
    %447 = vmatpush2.msra.mxu0 0.0
    %448 = vmatprep.mubr.f32.mxu0 0.0
    %v449 = vand.u32 %v64, 4294901760
    %v450 = vsub.f32 %v64, %v449
    %v451 = vand.u32 %v450, 4294901760
    %452 = vmatmul.mubr.f32.gmra.mxu0 %v451
    %v453 = vpop.f32.mrf.mxu0
    %v454 = vadd.f32 %v358, %v453
    %v455 = vpop.f32.mrf.mxu0
    %456 = vmatprep.mubr.f32.mxu0 0.0
    %v457 = vand.u32 %v67, 4294901760
    %v458 = vsub.f32 %v67, %v457
    %v459 = vand.u32 %v458, 4294901760
    %460 = vmatmul.mubr.f32.gmra.mxu0 %v459
    %v461 = vpop.f32.mrf.mxu0
    %v462 = vadd.f32 %v365, %v461
    %v463 = vpop.f32.mrf.mxu0
    %464 = vmatprep.mubr.f32.mxu0 0.0
    %v465 = vand.u32 %v70, 4294901760
    %v466 = vsub.f32 %v70, %v465
    %v467 = vand.u32 %v466, 4294901760
    %468 = vmatmul.mubr.f32.gmra.mxu0 %v467
    %v469 = vpop.f32.mrf.mxu0
    %v470 = vadd.f32 %v372, %v469
    %v471 = vpop.f32.mrf.mxu0
    %472 = vmatprep.mubr.f32.mxu0 0.0
    %v473 = vand.u32 %v73, 4294901760
    %v474 = vsub.f32 %v73, %v473
    %v475 = vand.u32 %v474, 4294901760
    %476 = vmatmul.mubr.f32.gmra.mxu0 %v475
    %v477 = vpop.f32.mrf.mxu0
    %v478 = vadd.f32 %v379, %v477
    %v479 = vpop.f32.mrf.mxu0
    %480 = vdwg.mxu0
    %481 = vmatprep.subr.mxu0 0.0
    %482 = vmatpush1.msra.mxu0 0.0
    %483 = vmatprep.subr.mxu0 0.0
    %484 = vmatpush1.msra.mxu0 0.0
    %485 = vmatprep.subr.mxu0 0.0
    %486 = vmatpush1.msra.mxu0 0.0
    %487 = vmatprep.subr.mxu0 0.0
    %488 = vmatpush1.msra.mxu0 0.0
    %489 = vmatprep.subr.mxu0 0.0
    %490 = vmatpush1.msra.mxu0 0.0
    %491 = vmatprep.subr.mxu0 0.0
    %492 = vmatpush1.msra.mxu0 0.0
    %493 = vmatprep.subr.mxu0 0.0
    %494 = vmatpush1.msra.mxu0 0.0
    %495 = vmatprep.subr.mxu0 0.0
    %496 = vmatpush1.msra.mxu0 0.0
    %497 = vmatprep.subr.mxu0 0.0
    %498 = vmatpush1.msra.mxu0 0.0
    %499 = vmatprep.subr.mxu0 0.0
    %500 = vmatpush1.msra.mxu0 0.0
    %501 = vmatprep.subr.mxu0 0.0
    %502 = vmatpush1.msra.mxu0 0.0
    %503 = vmatprep.subr.mxu0 0.0
    %504 = vmatpush1.msra.mxu0 0.0
    %505 = vmatprep.subr.mxu0 0.0
    %506 = vmatpush1.msra.mxu0 0.0
    %507 = vmatprep.subr.mxu0 0.0
    %508 = vmatpush1.msra.mxu0 0.0
    %509 = vmatprep.subr.mxu0 0.0
    %v510 = vand.u32 %v77, 4294901760
    %v511 = vsub.f32 %v77, %v510
    %v512 = vand.u32 %v511, 4294901760
    %513 = vmatpush1.msra.mxu0 %v512
    %514 = vmatprep.subr.mxu0 0.0
    %v515 = vand.u32 %v43, 4294901760
    %v516 = vsub.f32 %v43, %v515
    %v517 = vand.u32 %v516, 4294901760
    %518 = vmatpush1.msra.mxu0 %v517
    %519 = vmatprep.subr.mxu0 0.0
    %520 = vmatpush2.msra.mxu0 0.0
    %521 = vmatprep.subr.mxu0 0.0
    %522 = vmatpush2.msra.mxu0 0.0
    %523 = vmatprep.subr.mxu0 0.0
    %524 = vmatpush2.msra.mxu0 0.0
    %525 = vmatprep.subr.mxu0 0.0
    %526 = vmatpush2.msra.mxu0 0.0
    %527 = vmatprep.subr.mxu0 0.0
    %528 = vmatpush2.msra.mxu0 0.0
    %529 = vmatprep.subr.mxu0 0.0
    %530 = vmatpush2.msra.mxu0 0.0
    %531 = vmatprep.subr.mxu0 0.0
    %532 = vmatpush2.msra.mxu0 0.0
    %533 = vmatprep.subr.mxu0 0.0
    %534 = vmatpush2.msra.mxu0 0.0
    %535 = vmatprep.subr.mxu0 0.0
    %536 = vmatpush2.msra.mxu0 0.0
    %537 = vmatprep.subr.mxu0 0.0
    %538 = vmatpush2.msra.mxu0 0.0
    %539 = vmatprep.subr.mxu0 0.0
    %540 = vmatpush2.msra.mxu0 0.0
    %541 = vmatprep.subr.mxu0 0.0
    %542 = vmatpush2.msra.mxu0 0.0
    %543 = vmatprep.subr.mxu0 0.0
    %544 = vmatpush2.msra.mxu0 0.0
    %545 = vmatprep.subr.mxu0 0.0
    %546 = vmatpush2.msra.mxu0 0.0
    %547 = vmatprep.subr.mxu0 0.0
    %548 = vmatpush2.msra.mxu0 0.0
    %549 = vmatprep.subr.mxu0 0.0
    %550 = vmatpush2.msra.mxu0 0.0
    %551 = vmatprep.mubr.f32.mxu0 0.0
    %v552 = vand.u32 %v64, 4294901760
    %553 = vmatmul.mubr.f32.gmra.mxu0 %v552
    %v554 = vpop.f32.mrf.mxu0
    %v555 = vadd.f32 %v454, %v554
    %v556 = vpop.f32.mrf.mxu0
    %557 = vmatprep.mubr.f32.mxu0 0.0
    %v558 = vand.u32 %v67, 4294901760
    %559 = vmatmul.mubr.f32.gmra.mxu0 %v558
    %v560 = vpop.f32.mrf.mxu0
    %v561 = vadd.f32 %v462, %v560
    %v562 = vpop.f32.mrf.mxu0
    %563 = vmatprep.mubr.f32.mxu0 0.0
    %v564 = vand.u32 %v70, 4294901760
    %565 = vmatmul.mubr.f32.gmra.mxu0 %v564
    %v566 = vpop.f32.mrf.mxu0
    %v567 = vadd.f32 %v470, %v566
    %v568 = vpop.f32.mrf.mxu0
    %569 = vmatprep.mubr.f32.mxu0 0.0
    %v570 = vand.u32 %v73, 4294901760
    %571 = vmatmul.mubr.f32.gmra.mxu0 %v570
    %v572 = vpop.f32.mrf.mxu0
    %v573 = vadd.f32 %v478, %v572
    %v574 = vpop.f32.mrf.mxu0
    %575 = vdwg.mxu0
    %576 = vmatprep.subr.mxu0 0.0
    %577 = vmatpush1.msra.mxu0 0.0
    %578 = vmatprep.subr.mxu0 0.0
    %579 = vmatpush1.msra.mxu0 0.0
    %580 = vmatprep.subr.mxu0 0.0
    %581 = vmatpush1.msra.mxu0 0.0
    %582 = vmatprep.subr.mxu0 0.0
    %583 = vmatpush1.msra.mxu0 0.0
    %584 = vmatprep.subr.mxu0 0.0
    %585 = vmatpush1.msra.mxu0 0.0
    %586 = vmatprep.subr.mxu0 0.0
    %587 = vmatpush1.msra.mxu0 0.0
    %588 = vmatprep.subr.mxu0 0.0
    %589 = vmatpush1.msra.mxu0 0.0
    %590 = vmatprep.subr.mxu0 0.0
    %591 = vmatpush1.msra.mxu0 0.0
    %592 = vmatprep.subr.mxu0 0.0
    %593 = vmatpush1.msra.mxu0 0.0
    %594 = vmatprep.subr.mxu0 0.0
    %595 = vmatpush1.msra.mxu0 0.0
    %596 = vmatprep.subr.mxu0 0.0
    %597 = vmatpush1.msra.mxu0 0.0
    %598 = vmatprep.subr.mxu0 0.0
    %599 = vmatpush1.msra.mxu0 0.0
    %600 = vmatprep.subr.mxu0 0.0
    %601 = vmatpush1.msra.mxu0 0.0
    %602 = vmatprep.subr.mxu0 0.0
    %603 = vmatpush1.msra.mxu0 0.0
    %604 = vmatprep.subr.mxu0 0.0
    %v605 = vand.u32 %v77, 4294901760
    %606 = vmatpush1.msra.mxu0 %v605
    %607 = vmatprep.subr.mxu0 0.0
    %v608 = vand.u32 %v43, 4294901760
    %609 = vmatpush1.msra.mxu0 %v608
    %610 = vmatprep.subr.mxu0 0.0
    %611 = vmatpush2.msra.mxu0 0.0
    %612 = vmatprep.subr.mxu0 0.0
    %613 = vmatpush2.msra.mxu0 0.0
    %614 = vmatprep.subr.mxu0 0.0
    %615 = vmatpush2.msra.mxu0 0.0
    %616 = vmatprep.subr.mxu0 0.0
    %617 = vmatpush2.msra.mxu0 0.0
    %618 = vmatprep.subr.mxu0 0.0
    %619 = vmatpush2.msra.mxu0 0.0
    %620 = vmatprep.subr.mxu0 0.0
    %621 = vmatpush2.msra.mxu0 0.0
    %622 = vmatprep.subr.mxu0 0.0
    %623 = vmatpush2.msra.mxu0 0.0
    %624 = vmatprep.subr.mxu0 0.0
    %625 = vmatpush2.msra.mxu0 0.0
    %626 = vmatprep.subr.mxu0 0.0
    %627 = vmatpush2.msra.mxu0 0.0
    %628 = vmatprep.subr.mxu0 0.0
    %629 = vmatpush2.msra.mxu0 0.0
    %630 = vmatprep.subr.mxu0 0.0
    %631 = vmatpush2.msra.mxu0 0.0
    %632 = vmatprep.subr.mxu0 0.0
    %633 = vmatpush2.msra.mxu0 0.0
    %634 = vmatprep.subr.mxu0 0.0
    %635 = vmatpush2.msra.mxu0 0.0
    %636 = vmatprep.subr.mxu0 0.0
    %637 = vmatpush2.msra.mxu0 0.0
    %638 = vmatprep.subr.mxu0 0.0
    %639 = vmatpush2.msra.mxu0 0.0
    %640 = vmatprep.subr.mxu0 0.0
    %641 = vmatpush2.msra.mxu0 0.0
    %642 = vmatprep.mubr.f32.mxu0 0.0
    %v643 = vand.u32 %v64, 4294901760
    %644 = vmatmul.mubr.f32.gmra.mxu0 %v643
    %v645 = vpop.f32.mrf.mxu0
    %v646 = vadd.f32 %v555, %v645
    %v647 = vpop.f32.mrf.mxu0
    %648 = vmatprep.mubr.f32.mxu0 0.0
    %v649 = vand.u32 %v67, 4294901760
    %650 = vmatmul.mubr.f32.gmra.mxu0 %v649
    %v651 = vpop.f32.mrf.mxu0
    %v652 = vadd.f32 %v561, %v651
    %v653 = vpop.f32.mrf.mxu0
    %654 = vmatprep.mubr.f32.mxu0 0.0
    %v655 = vand.u32 %v70, 4294901760
    %656 = vmatmul.mubr.f32.gmra.mxu0 %v655
    %v657 = vpop.f32.mrf.mxu0
    %v658 = vadd.f32 %v567, %v657
    %v659 = vpop.f32.mrf.mxu0
    %660 = vmatprep.mubr.f32.mxu0 0.0
    %v661 = vand.u32 %v73, 4294901760
    %662 = vmatmul.mubr.f32.gmra.mxu0 %v661
    %v663 = vpop.f32.mrf.mxu0
    %v664 = vadd.f32 %v573, %v663
    %v665 = vpop.f32.mrf.mxu0
    %666 = vdwg.mxu0
    %v668 = vsel %vm75, %v54, 0
    %670 = vmatprep.subr.mxu0 0.0
    %671 = vmatpush1.msra.mxu0 0.0
    %672 = vmatprep.subr.mxu0 0.0
    %673 = vmatpush1.msra.mxu0 0.0
    %674 = vmatprep.subr.mxu0 0.0
    %675 = vmatpush1.msra.mxu0 0.0
    %676 = vmatprep.subr.mxu0 0.0
    %677 = vmatpush1.msra.mxu0 0.0
    %678 = vmatprep.subr.mxu0 0.0
    %679 = vmatpush1.msra.mxu0 0.0
    %680 = vmatprep.subr.mxu0 0.0
    %681 = vmatpush1.msra.mxu0 0.0
    %682 = vmatprep.subr.mxu0 0.0
    %683 = vmatpush1.msra.mxu0 0.0
    %684 = vmatprep.subr.mxu0 0.0
    %685 = vmatpush1.msra.mxu0 0.0
    %686 = vmatprep.subr.mxu0 0.0
    %687 = vmatpush1.msra.mxu0 0.0
    %688 = vmatprep.subr.mxu0 0.0
    %689 = vmatpush1.msra.mxu0 0.0
    %690 = vmatprep.subr.mxu0 0.0
    %691 = vmatpush1.msra.mxu0 0.0
    %692 = vmatprep.subr.mxu0 0.0
    %693 = vmatpush1.msra.mxu0 0.0
    %694 = vmatprep.subr.mxu0 0.0
    %695 = vmatpush1.msra.mxu0 0.0
    %696 = vmatprep.subr.mxu0 0.0
    %697 = vmatpush1.msra.mxu0 0.0
    %698 = vmatprep.subr.mxu0 0.0
    %v699 = vand.u32 %v668, 4294901760
    %700 = vmatpush1.msra.mxu0 %v699
    %701 = vmatprep.subr.mxu0 0.0
    %v702 = vand.u32 %v53, 4294901760
    %703 = vmatpush1.msra.mxu0 %v702
    %704 = vmatprep.subr.mxu0 0.0
    %705 = vmatpush2.msra.mxu0 0.0
    %706 = vmatprep.subr.mxu0 0.0
    %707 = vmatpush2.msra.mxu0 0.0
    %708 = vmatprep.subr.mxu0 0.0
    %709 = vmatpush2.msra.mxu0 0.0
    %710 = vmatprep.subr.mxu0 0.0
    %711 = vmatpush2.msra.mxu0 0.0
    %712 = vmatprep.subr.mxu0 0.0
    %713 = vmatpush2.msra.mxu0 0.0
    %714 = vmatprep.subr.mxu0 0.0
    %715 = vmatpush2.msra.mxu0 0.0
    %716 = vmatprep.subr.mxu0 0.0
    %717 = vmatpush2.msra.mxu0 0.0
    %718 = vmatprep.subr.mxu0 0.0
    %719 = vmatpush2.msra.mxu0 0.0
    %720 = vmatprep.subr.mxu0 0.0
    %721 = vmatpush2.msra.mxu0 0.0
    %722 = vmatprep.subr.mxu0 0.0
    %723 = vmatpush2.msra.mxu0 0.0
    %724 = vmatprep.subr.mxu0 0.0
    %725 = vmatpush2.msra.mxu0 0.0
    %726 = vmatprep.subr.mxu0 0.0
    %727 = vmatpush2.msra.mxu0 0.0
    %728 = vmatprep.subr.mxu0 0.0
    %729 = vmatpush2.msra.mxu0 0.0
    %730 = vmatprep.subr.mxu0 0.0
    %731 = vmatpush2.msra.mxu0 0.0
    %732 = vmatprep.subr.mxu0 0.0
    %733 = vmatpush2.msra.mxu0 0.0
    %734 = vmatprep.subr.mxu0 0.0
    %735 = vmatpush2.msra.mxu0 0.0
    %736 = vmatprep.mubr.f32.mxu0 0.0
    %v737 = vand.u32 %v64, 4294901760
    %v738 = vsub.f32 %v64, %v737
    %v739 = vand.u32 %v738, 4294901760
    %v740 = vsub.f32 %v738, %v739
    %v741 = vand.u32 %v740, 4294901760
    %742 = vmatmul.mubr.f32.gmra.mxu0 %v741
    %v743 = vpop.f32.mrf.mxu0
    %v744 = vadd.f32 0.0, %v743
    %v745 = vpop.f32.mrf.mxu0
    %746 = vmatprep.mubr.f32.mxu0 0.0
    %v747 = vand.u32 %v67, 4294901760
    %v748 = vsub.f32 %v67, %v747
    %v749 = vand.u32 %v748, 4294901760
    %v750 = vsub.f32 %v748, %v749
    %v751 = vand.u32 %v750, 4294901760
    %752 = vmatmul.mubr.f32.gmra.mxu0 %v751
    %v753 = vpop.f32.mrf.mxu0
    %v754 = vadd.f32 0.0, %v753
    %v755 = vpop.f32.mrf.mxu0
    %756 = vmatprep.mubr.f32.mxu0 0.0
    %v757 = vand.u32 %v70, 4294901760
    %v758 = vsub.f32 %v70, %v757
    %v759 = vand.u32 %v758, 4294901760
    %v760 = vsub.f32 %v758, %v759
    %v761 = vand.u32 %v760, 4294901760
    %762 = vmatmul.mubr.f32.gmra.mxu0 %v761
    %v763 = vpop.f32.mrf.mxu0
    %v764 = vadd.f32 0.0, %v763
    %v765 = vpop.f32.mrf.mxu0
    %766 = vmatprep.mubr.f32.mxu0 0.0
    %v767 = vand.u32 %v73, 4294901760
    %v768 = vsub.f32 %v73, %v767
    %v769 = vand.u32 %v768, 4294901760
    %v770 = vsub.f32 %v768, %v769
    %v771 = vand.u32 %v770, 4294901760
    %772 = vmatmul.mubr.f32.gmra.mxu0 %v771
    %v773 = vpop.f32.mrf.mxu0
    %v774 = vadd.f32 0.0, %v773
    %v775 = vpop.f32.mrf.mxu0
    %776 = vdwg.mxu0
    %777 = vmatprep.subr.mxu0 0.0
    %778 = vmatpush1.msra.mxu0 0.0
    %779 = vmatprep.subr.mxu0 0.0
    %780 = vmatpush1.msra.mxu0 0.0
    %781 = vmatprep.subr.mxu0 0.0
    %782 = vmatpush1.msra.mxu0 0.0
    %783 = vmatprep.subr.mxu0 0.0
    %784 = vmatpush1.msra.mxu0 0.0
    %785 = vmatprep.subr.mxu0 0.0
    %786 = vmatpush1.msra.mxu0 0.0
    %787 = vmatprep.subr.mxu0 0.0
    %788 = vmatpush1.msra.mxu0 0.0
    %789 = vmatprep.subr.mxu0 0.0
    %790 = vmatpush1.msra.mxu0 0.0
    %791 = vmatprep.subr.mxu0 0.0
    %792 = vmatpush1.msra.mxu0 0.0
    %793 = vmatprep.subr.mxu0 0.0
    %794 = vmatpush1.msra.mxu0 0.0
    %795 = vmatprep.subr.mxu0 0.0
    %796 = vmatpush1.msra.mxu0 0.0
    %797 = vmatprep.subr.mxu0 0.0
    %798 = vmatpush1.msra.mxu0 0.0
    %799 = vmatprep.subr.mxu0 0.0
    %800 = vmatpush1.msra.mxu0 0.0
    %801 = vmatprep.subr.mxu0 0.0
    %802 = vmatpush1.msra.mxu0 0.0
    %803 = vmatprep.subr.mxu0 0.0
    %804 = vmatpush1.msra.mxu0 0.0
    %805 = vmatprep.subr.mxu0 0.0
    %v806 = vand.u32 %v668, 4294901760
    %v807 = vsub.f32 %v668, %v806
    %v808 = vand.u32 %v807, 4294901760
    %v809 = vsub.f32 %v807, %v808
    %v810 = vand.u32 %v809, 4294901760
    %811 = vmatpush1.msra.mxu0 %v810
    %812 = vmatprep.subr.mxu0 0.0
    %v813 = vand.u32 %v53, 4294901760
    %v814 = vsub.f32 %v53, %v813
    %v815 = vand.u32 %v814, 4294901760
    %v816 = vsub.f32 %v814, %v815
    %v817 = vand.u32 %v816, 4294901760
    %818 = vmatpush1.msra.mxu0 %v817
    %819 = vmatprep.subr.mxu0 0.0
    %820 = vmatpush2.msra.mxu0 0.0
    %821 = vmatprep.subr.mxu0 0.0
    %822 = vmatpush2.msra.mxu0 0.0
    %823 = vmatprep.subr.mxu0 0.0
    %824 = vmatpush2.msra.mxu0 0.0
    %825 = vmatprep.subr.mxu0 0.0
    %826 = vmatpush2.msra.mxu0 0.0
    %827 = vmatprep.subr.mxu0 0.0
    %828 = vmatpush2.msra.mxu0 0.0
    %829 = vmatprep.subr.mxu0 0.0
    %830 = vmatpush2.msra.mxu0 0.0
    %831 = vmatprep.subr.mxu0 0.0
    %832 = vmatpush2.msra.mxu0 0.0
    %833 = vmatprep.subr.mxu0 0.0
    %834 = vmatpush2.msra.mxu0 0.0
    %835 = vmatprep.subr.mxu0 0.0
    %836 = vmatpush2.msra.mxu0 0.0
    %837 = vmatprep.subr.mxu0 0.0
    %838 = vmatpush2.msra.mxu0 0.0
    %839 = vmatprep.subr.mxu0 0.0
    %840 = vmatpush2.msra.mxu0 0.0
    %841 = vmatprep.subr.mxu0 0.0
    %842 = vmatpush2.msra.mxu0 0.0
    %843 = vmatprep.subr.mxu0 0.0
    %844 = vmatpush2.msra.mxu0 0.0
    %845 = vmatprep.subr.mxu0 0.0
    %846 = vmatpush2.msra.mxu0 0.0
    %847 = vmatprep.subr.mxu0 0.0
    %848 = vmatpush2.msra.mxu0 0.0
    %849 = vmatprep.subr.mxu0 0.0
    %850 = vmatpush2.msra.mxu0 0.0
    %851 = vmatprep.mubr.f32.mxu0 0.0
    %v852 = vand.u32 %v64, 4294901760
    %853 = vmatmul.mubr.f32.gmra.mxu0 %v852
    %v854 = vpop.f32.mrf.mxu0
    %v855 = vadd.f32 %v744, %v854
    %v856 = vpop.f32.mrf.mxu0
    %857 = vmatprep.mubr.f32.mxu0 0.0
    %v858 = vand.u32 %v67, 4294901760
    %859 = vmatmul.mubr.f32.gmra.mxu0 %v858
    %v860 = vpop.f32.mrf.mxu0
    %v861 = vadd.f32 %v754, %v860
    %v862 = vpop.f32.mrf.mxu0
    %863 = vmatprep.mubr.f32.mxu0 0.0
    %v864 = vand.u32 %v70, 4294901760
    %865 = vmatmul.mubr.f32.gmra.mxu0 %v864
    %v866 = vpop.f32.mrf.mxu0
    %v867 = vadd.f32 %v764, %v866
    %v868 = vpop.f32.mrf.mxu0
    %869 = vmatprep.mubr.f32.mxu0 0.0
    %v870 = vand.u32 %v73, 4294901760
    %871 = vmatmul.mubr.f32.gmra.mxu0 %v870
    %v872 = vpop.f32.mrf.mxu0
    %v873 = vadd.f32 %v774, %v872
    %v874 = vpop.f32.mrf.mxu0
    %875 = vdwg.mxu0
    %876 = vmatprep.subr.mxu0 0.0
    %877 = vmatpush1.msra.mxu0 0.0
    %878 = vmatprep.subr.mxu0 0.0
    %879 = vmatpush1.msra.mxu0 0.0
    %880 = vmatprep.subr.mxu0 0.0
    %881 = vmatpush1.msra.mxu0 0.0
    %882 = vmatprep.subr.mxu0 0.0
    %883 = vmatpush1.msra.mxu0 0.0
    %884 = vmatprep.subr.mxu0 0.0
    %885 = vmatpush1.msra.mxu0 0.0
    %886 = vmatprep.subr.mxu0 0.0
    %887 = vmatpush1.msra.mxu0 0.0
    %888 = vmatprep.subr.mxu0 0.0
    %889 = vmatpush1.msra.mxu0 0.0
    %890 = vmatprep.subr.mxu0 0.0
    %891 = vmatpush1.msra.mxu0 0.0
    %892 = vmatprep.subr.mxu0 0.0
    %893 = vmatpush1.msra.mxu0 0.0
    %894 = vmatprep.subr.mxu0 0.0
    %895 = vmatpush1.msra.mxu0 0.0
    %896 = vmatprep.subr.mxu0 0.0
    %897 = vmatpush1.msra.mxu0 0.0
    %898 = vmatprep.subr.mxu0 0.0
    %899 = vmatpush1.msra.mxu0 0.0
    %900 = vmatprep.subr.mxu0 0.0
    %901 = vmatpush1.msra.mxu0 0.0
    %902 = vmatprep.subr.mxu0 0.0
    %903 = vmatpush1.msra.mxu0 0.0
    %904 = vmatprep.subr.mxu0 0.0
    %v905 = vand.u32 %v668, 4294901760
    %v906 = vsub.f32 %v668, %v905
    %907 = vmatpush1.msra.mxu0 %v906
    %908 = vmatprep.subr.mxu0 0.0
    %v909 = vand.u32 %v53, 4294901760
    %v910 = vsub.f32 %v53, %v909
    %911 = vmatpush1.msra.mxu0 %v910
    %912 = vmatprep.subr.mxu0 0.0
    %913 = vmatpush2.msra.mxu0 0.0
    %914 = vmatprep.subr.mxu0 0.0
    %915 = vmatpush2.msra.mxu0 0.0
    %916 = vmatprep.subr.mxu0 0.0
    %917 = vmatpush2.msra.mxu0 0.0
    %918 = vmatprep.subr.mxu0 0.0
    %919 = vmatpush2.msra.mxu0 0.0
    %920 = vmatprep.subr.mxu0 0.0
    %921 = vmatpush2.msra.mxu0 0.0
    %922 = vmatprep.subr.mxu0 0.0
    %923 = vmatpush2.msra.mxu0 0.0
    %924 = vmatprep.subr.mxu0 0.0
    %925 = vmatpush2.msra.mxu0 0.0
    %926 = vmatprep.subr.mxu0 0.0
    %927 = vmatpush2.msra.mxu0 0.0
    %928 = vmatprep.subr.mxu0 0.0
    %929 = vmatpush2.msra.mxu0 0.0
    %930 = vmatprep.subr.mxu0 0.0
    %931 = vmatpush2.msra.mxu0 0.0
    %932 = vmatprep.subr.mxu0 0.0
    %933 = vmatpush2.msra.mxu0 0.0
    %934 = vmatprep.subr.mxu0 0.0
    %935 = vmatpush2.msra.mxu0 0.0
    %936 = vmatprep.subr.mxu0 0.0
    %937 = vmatpush2.msra.mxu0 0.0
    %938 = vmatprep.subr.mxu0 0.0
    %939 = vmatpush2.msra.mxu0 0.0
    %940 = vmatprep.subr.mxu0 0.0
    %941 = vmatpush2.msra.mxu0 0.0
    %942 = vmatprep.subr.mxu0 0.0
    %943 = vmatpush2.msra.mxu0 0.0
    %944 = vmatprep.mubr.f32.mxu0 0.0
    %v945 = vand.u32 %v64, 4294901760
    %v946 = vsub.f32 %v64, %v945
    %947 = vmatmul.mubr.f32.gmra.mxu0 %v946
    %v948 = vpop.f32.mrf.mxu0
    %v949 = vadd.f32 %v855, %v948
    %v950 = vpop.f32.mrf.mxu0
    %951 = vmatprep.mubr.f32.mxu0 0.0
    %v952 = vand.u32 %v67, 4294901760
    %v953 = vsub.f32 %v67, %v952
    %954 = vmatmul.mubr.f32.gmra.mxu0 %v953
    %v955 = vpop.f32.mrf.mxu0
    %v956 = vadd.f32 %v861, %v955
    %v957 = vpop.f32.mrf.mxu0
    %958 = vmatprep.mubr.f32.mxu0 0.0
    %v959 = vand.u32 %v70, 4294901760
    %v960 = vsub.f32 %v70, %v959
    %961 = vmatmul.mubr.f32.gmra.mxu0 %v960
    %v962 = vpop.f32.mrf.mxu0
    %v963 = vadd.f32 %v867, %v962
    %v964 = vpop.f32.mrf.mxu0
    %965 = vmatprep.mubr.f32.mxu0 0.0
    %v966 = vand.u32 %v73, 4294901760
    %v967 = vsub.f32 %v73, %v966
    %968 = vmatmul.mubr.f32.gmra.mxu0 %v967
    %v969 = vpop.f32.mrf.mxu0
    %v970 = vadd.f32 %v873, %v969
    %v971 = vpop.f32.mrf.mxu0
    %972 = vdwg.mxu0
    %973 = vmatprep.subr.mxu0 0.0
    %974 = vmatpush1.msra.mxu0 0.0
    %975 = vmatprep.subr.mxu0 0.0
    %976 = vmatpush1.msra.mxu0 0.0
    %977 = vmatprep.subr.mxu0 0.0
    %978 = vmatpush1.msra.mxu0 0.0
    %979 = vmatprep.subr.mxu0 0.0
    %980 = vmatpush1.msra.mxu0 0.0
    %981 = vmatprep.subr.mxu0 0.0
    %982 = vmatpush1.msra.mxu0 0.0
    %983 = vmatprep.subr.mxu0 0.0
    %984 = vmatpush1.msra.mxu0 0.0
    %985 = vmatprep.subr.mxu0 0.0
    %986 = vmatpush1.msra.mxu0 0.0
    %987 = vmatprep.subr.mxu0 0.0
    %988 = vmatpush1.msra.mxu0 0.0
    %989 = vmatprep.subr.mxu0 0.0
    %990 = vmatpush1.msra.mxu0 0.0
    %991 = vmatprep.subr.mxu0 0.0
    %992 = vmatpush1.msra.mxu0 0.0
    %993 = vmatprep.subr.mxu0 0.0
    %994 = vmatpush1.msra.mxu0 0.0
    %995 = vmatprep.subr.mxu0 0.0
    %996 = vmatpush1.msra.mxu0 0.0
    %997 = vmatprep.subr.mxu0 0.0
    %998 = vmatpush1.msra.mxu0 0.0
    %999 = vmatprep.subr.mxu0 0.0
    %1000 = vmatpush1.msra.mxu0 0.0
    %1001 = vmatprep.subr.mxu0 0.0
    %v1002 = vand.u32 %v668, 4294901760
    %1003 = vmatpush1.msra.mxu0 %v1002
    %1004 = vmatprep.subr.mxu0 0.0
    %v1005 = vand.u32 %v53, 4294901760
    %1006 = vmatpush1.msra.mxu0 %v1005
    %1007 = vmatprep.subr.mxu0 0.0
    %1008 = vmatpush2.msra.mxu0 0.0
    %1009 = vmatprep.subr.mxu0 0.0
    %1010 = vmatpush2.msra.mxu0 0.0
    %1011 = vmatprep.subr.mxu0 0.0
    %1012 = vmatpush2.msra.mxu0 0.0
    %1013 = vmatprep.subr.mxu0 0.0
    %1014 = vmatpush2.msra.mxu0 0.0
    %1015 = vmatprep.subr.mxu0 0.0
    %1016 = vmatpush2.msra.mxu0 0.0
    %1017 = vmatprep.subr.mxu0 0.0
    %1018 = vmatpush2.msra.mxu0 0.0
    %1019 = vmatprep.subr.mxu0 0.0
    %1020 = vmatpush2.msra.mxu0 0.0
    %1021 = vmatprep.subr.mxu0 0.0
    %1022 = vmatpush2.msra.mxu0 0.0
    %1023 = vmatprep.subr.mxu0 0.0
    %1024 = vmatpush2.msra.mxu0 0.0
    %1025 = vmatprep.subr.mxu0 0.0
    %1026 = vmatpush2.msra.mxu0 0.0
    %1027 = vmatprep.subr.mxu0 0.0
    %1028 = vmatpush2.msra.mxu0 0.0
    %1029 = vmatprep.subr.mxu0 0.0
    %1030 = vmatpush2.msra.mxu0 0.0
    %1031 = vmatprep.subr.mxu0 0.0
    %1032 = vmatpush2.msra.mxu0 0.0
    %1033 = vmatprep.subr.mxu0 0.0
    %1034 = vmatpush2.msra.mxu0 0.0
    %1035 = vmatprep.subr.mxu0 0.0
    %1036 = vmatpush2.msra.mxu0 0.0
    %1037 = vmatprep.subr.mxu0 0.0
    %1038 = vmatpush2.msra.mxu0 0.0
    %1039 = vmatprep.mubr.f32.mxu0 0.0
    %v1040 = vand.u32 %v64, 4294901760
    %v1041 = vsub.f32 %v64, %v1040
    %v1042 = vand.u32 %v1041, 4294901760
    %1043 = vmatmul.mubr.f32.gmra.mxu0 %v1042
    %v1044 = vpop.f32.mrf.mxu0
    %v1045 = vadd.f32 %v949, %v1044
    %v1046 = vpop.f32.mrf.mxu0
    %1047 = vmatprep.mubr.f32.mxu0 0.0
    %v1048 = vand.u32 %v67, 4294901760
    %v1049 = vsub.f32 %v67, %v1048
    %v1050 = vand.u32 %v1049, 4294901760
    %1051 = vmatmul.mubr.f32.gmra.mxu0 %v1050
    %v1052 = vpop.f32.mrf.mxu0
    %v1053 = vadd.f32 %v956, %v1052
    %v1054 = vpop.f32.mrf.mxu0
    %1055 = vmatprep.mubr.f32.mxu0 0.0
    %v1056 = vand.u32 %v70, 4294901760
    %v1057 = vsub.f32 %v70, %v1056
    %v1058 = vand.u32 %v1057, 4294901760
    %1059 = vmatmul.mubr.f32.gmra.mxu0 %v1058
    %v1060 = vpop.f32.mrf.mxu0
    %v1061 = vadd.f32 %v963, %v1060
    %v1062 = vpop.f32.mrf.mxu0
    %1063 = vmatprep.mubr.f32.mxu0 0.0
    %v1064 = vand.u32 %v73, 4294901760
    %v1065 = vsub.f32 %v73, %v1064
    %v1066 = vand.u32 %v1065, 4294901760
    %1067 = vmatmul.mubr.f32.gmra.mxu0 %v1066
    %v1068 = vpop.f32.mrf.mxu0
    %v1069 = vadd.f32 %v970, %v1068
    %v1070 = vpop.f32.mrf.mxu0
    %1071 = vdwg.mxu0
    %1072 = vmatprep.subr.mxu0 0.0
    %1073 = vmatpush1.msra.mxu0 0.0
    %1074 = vmatprep.subr.mxu0 0.0
    %1075 = vmatpush1.msra.mxu0 0.0
    %1076 = vmatprep.subr.mxu0 0.0
    %1077 = vmatpush1.msra.mxu0 0.0
    %1078 = vmatprep.subr.mxu0 0.0
    %1079 = vmatpush1.msra.mxu0 0.0
    %1080 = vmatprep.subr.mxu0 0.0
    %1081 = vmatpush1.msra.mxu0 0.0
    %1082 = vmatprep.subr.mxu0 0.0
    %1083 = vmatpush1.msra.mxu0 0.0
    %1084 = vmatprep.subr.mxu0 0.0
    %1085 = vmatpush1.msra.mxu0 0.0
    %1086 = vmatprep.subr.mxu0 0.0
    %1087 = vmatpush1.msra.mxu0 0.0
    %1088 = vmatprep.subr.mxu0 0.0
    %1089 = vmatpush1.msra.mxu0 0.0
    %1090 = vmatprep.subr.mxu0 0.0
    %1091 = vmatpush1.msra.mxu0 0.0
    %1092 = vmatprep.subr.mxu0 0.0
    %1093 = vmatpush1.msra.mxu0 0.0
    %1094 = vmatprep.subr.mxu0 0.0
    %1095 = vmatpush1.msra.mxu0 0.0
    %1096 = vmatprep.subr.mxu0 0.0
    %1097 = vmatpush1.msra.mxu0 0.0
    %1098 = vmatprep.subr.mxu0 0.0
    %1099 = vmatpush1.msra.mxu0 0.0
    %1100 = vmatprep.subr.mxu0 0.0
    %v1101 = vand.u32 %v668, 4294901760
    %v1102 = vsub.f32 %v668, %v1101
    %v1103 = vand.u32 %v1102, 4294901760
    %1104 = vmatpush1.msra.mxu0 %v1103
    %1105 = vmatprep.subr.mxu0 0.0
    %v1106 = vand.u32 %v53, 4294901760
    %v1107 = vsub.f32 %v53, %v1106
    %v1108 = vand.u32 %v1107, 4294901760
    %1109 = vmatpush1.msra.mxu0 %v1108
    %1110 = vmatprep.subr.mxu0 0.0
    %1111 = vmatpush2.msra.mxu0 0.0
    %1112 = vmatprep.subr.mxu0 0.0
    %1113 = vmatpush2.msra.mxu0 0.0
    %1114 = vmatprep.subr.mxu0 0.0
    %1115 = vmatpush2.msra.mxu0 0.0
    %1116 = vmatprep.subr.mxu0 0.0
    %1117 = vmatpush2.msra.mxu0 0.0
    %1118 = vmatprep.subr.mxu0 0.0
    %1119 = vmatpush2.msra.mxu0 0.0
    %1120 = vmatprep.subr.mxu0 0.0
    %1121 = vmatpush2.msra.mxu0 0.0
    %1122 = vmatprep.subr.mxu0 0.0
    %1123 = vmatpush2.msra.mxu0 0.0
    %1124 = vmatprep.subr.mxu0 0.0
    %1125 = vmatpush2.msra.mxu0 0.0
    %1126 = vmatprep.subr.mxu0 0.0
    %1127 = vmatpush2.msra.mxu0 0.0
    %1128 = vmatprep.subr.mxu0 0.0
    %1129 = vmatpush2.msra.mxu0 0.0
    %1130 = vmatprep.subr.mxu0 0.0
    %1131 = vmatpush2.msra.mxu0 0.0
    %1132 = vmatprep.subr.mxu0 0.0
    %1133 = vmatpush2.msra.mxu0 0.0
    %1134 = vmatprep.subr.mxu0 0.0
    %1135 = vmatpush2.msra.mxu0 0.0
    %1136 = vmatprep.subr.mxu0 0.0
    %1137 = vmatpush2.msra.mxu0 0.0
    %1138 = vmatprep.subr.mxu0 0.0
    %1139 = vmatpush2.msra.mxu0 0.0
    %1140 = vmatprep.subr.mxu0 0.0
    %1141 = vmatpush2.msra.mxu0 0.0
    %1142 = vmatprep.mubr.f32.mxu0 0.0
    %v1143 = vand.u32 %v64, 4294901760
    %1144 = vmatmul.mubr.f32.gmra.mxu0 %v1143
    %v1145 = vpop.f32.mrf.mxu0
    %v1146 = vadd.f32 %v1045, %v1145
    %v1147 = vpop.f32.mrf.mxu0
    %1148 = vmatprep.mubr.f32.mxu0 0.0
    %v1149 = vand.u32 %v67, 4294901760
    %1150 = vmatmul.mubr.f32.gmra.mxu0 %v1149
    %v1151 = vpop.f32.mrf.mxu0
    %v1152 = vadd.f32 %v1053, %v1151
    %v1153 = vpop.f32.mrf.mxu0
    %1154 = vmatprep.mubr.f32.mxu0 0.0
    %v1155 = vand.u32 %v70, 4294901760
    %1156 = vmatmul.mubr.f32.gmra.mxu0 %v1155
    %v1157 = vpop.f32.mrf.mxu0
    %v1158 = vadd.f32 %v1061, %v1157
    %v1159 = vpop.f32.mrf.mxu0
    %1160 = vmatprep.mubr.f32.mxu0 0.0
    %v1161 = vand.u32 %v73, 4294901760
    %1162 = vmatmul.mubr.f32.gmra.mxu0 %v1161
    %v1163 = vpop.f32.mrf.mxu0
    %v1164 = vadd.f32 %v1069, %v1163
    %v1165 = vpop.f32.mrf.mxu0
    %1166 = vdwg.mxu0
    %1167 = vmatprep.subr.mxu0 0.0
    %1168 = vmatpush1.msra.mxu0 0.0
    %1169 = vmatprep.subr.mxu0 0.0
    %1170 = vmatpush1.msra.mxu0 0.0
    %1171 = vmatprep.subr.mxu0 0.0
    %1172 = vmatpush1.msra.mxu0 0.0
    %1173 = vmatprep.subr.mxu0 0.0
    %1174 = vmatpush1.msra.mxu0 0.0
    %1175 = vmatprep.subr.mxu0 0.0
    %1176 = vmatpush1.msra.mxu0 0.0
    %1177 = vmatprep.subr.mxu0 0.0
    %1178 = vmatpush1.msra.mxu0 0.0
    %1179 = vmatprep.subr.mxu0 0.0
    %1180 = vmatpush1.msra.mxu0 0.0
    %1181 = vmatprep.subr.mxu0 0.0
    %1182 = vmatpush1.msra.mxu0 0.0
    %1183 = vmatprep.subr.mxu0 0.0
    %1184 = vmatpush1.msra.mxu0 0.0
    %1185 = vmatprep.subr.mxu0 0.0
    %1186 = vmatpush1.msra.mxu0 0.0
    %1187 = vmatprep.subr.mxu0 0.0
    %1188 = vmatpush1.msra.mxu0 0.0
    %1189 = vmatprep.subr.mxu0 0.0
    %1190 = vmatpush1.msra.mxu0 0.0
    %1191 = vmatprep.subr.mxu0 0.0
    %1192 = vmatpush1.msra.mxu0 0.0
    %1193 = vmatprep.subr.mxu0 0.0
    %1194 = vmatpush1.msra.mxu0 0.0
    %1195 = vmatprep.subr.mxu0 0.0
    %v1196 = vand.u32 %v668, 4294901760
    %1197 = vmatpush1.msra.mxu0 %v1196
    %1198 = vmatprep.subr.mxu0 0.0
    %v1199 = vand.u32 %v53, 4294901760
    %1200 = vmatpush1.msra.mxu0 %v1199
    %1201 = vmatprep.subr.mxu0 0.0
    %1202 = vmatpush2.msra.mxu0 0.0
    %1203 = vmatprep.subr.mxu0 0.0
    %1204 = vmatpush2.msra.mxu0 0.0
    %1205 = vmatprep.subr.mxu0 0.0
    %1206 = vmatpush2.msra.mxu0 0.0
    %1207 = vmatprep.subr.mxu0 0.0
    %1208 = vmatpush2.msra.mxu0 0.0
    %1209 = vmatprep.subr.mxu0 0.0
    %1210 = vmatpush2.msra.mxu0 0.0
    %1211 = vmatprep.subr.mxu0 0.0
    %1212 = vmatpush2.msra.mxu0 0.0
    %1213 = vmatprep.subr.mxu0 0.0
    %1214 = vmatpush2.msra.mxu0 0.0
    %1215 = vmatprep.subr.mxu0 0.0
    %1216 = vmatpush2.msra.mxu0 0.0
    %1217 = vmatprep.subr.mxu0 0.0
    %1218 = vmatpush2.msra.mxu0 0.0
    %1219 = vmatprep.subr.mxu0 0.0
    %1220 = vmatpush2.msra.mxu0 0.0
    %1221 = vmatprep.subr.mxu0 0.0
    %1222 = vmatpush2.msra.mxu0 0.0
    %1223 = vmatprep.subr.mxu0 0.0
    %1224 = vmatpush2.msra.mxu0 0.0
    %1225 = vmatprep.subr.mxu0 0.0
    %1226 = vmatpush2.msra.mxu0 0.0
    %1227 = vmatprep.subr.mxu0 0.0
    %1228 = vmatpush2.msra.mxu0 0.0
    %1229 = vmatprep.subr.mxu0 0.0
    %1230 = vmatpush2.msra.mxu0 0.0
    %1231 = vmatprep.subr.mxu0 0.0
    %1232 = vmatpush2.msra.mxu0 0.0
    %1233 = vmatprep.mubr.f32.mxu0 0.0
    %v1234 = vand.u32 %v64, 4294901760
    %1235 = vmatmul.mubr.f32.gmra.mxu0 %v1234
    %v1236 = vpop.f32.mrf.mxu0
    %v1237 = vadd.f32 %v1146, %v1236
    %v1238 = vpop.f32.mrf.mxu0
    %1239 = vmatprep.mubr.f32.mxu0 0.0
    %v1240 = vand.u32 %v67, 4294901760
    %1241 = vmatmul.mubr.f32.gmra.mxu0 %v1240
    %v1242 = vpop.f32.mrf.mxu0
    %v1243 = vadd.f32 %v1152, %v1242
    %v1244 = vpop.f32.mrf.mxu0
    %1245 = vmatprep.mubr.f32.mxu0 0.0
    %v1246 = vand.u32 %v70, 4294901760
    %1247 = vmatmul.mubr.f32.gmra.mxu0 %v1246
    %v1248 = vpop.f32.mrf.mxu0
    %v1249 = vadd.f32 %v1158, %v1248
    %v1250 = vpop.f32.mrf.mxu0
    %1251 = vmatprep.mubr.f32.mxu0 0.0
    %v1252 = vand.u32 %v73, 4294901760
    %1253 = vmatmul.mubr.f32.gmra.mxu0 %v1252
    %v1254 = vpop.f32.mrf.mxu0
    %v1255 = vadd.f32 %v1164, %v1254
    %v1256 = vpop.f32.mrf.mxu0
    %1257 = vdwg.mxu0
    %vm1258 = vcmask 39936
    %v1260 = vsel %vm1258, %v25, 0
    %v1263 = vsel %vm1258, %v26, 0
    %v1266 = vsel %vm1258, %v27, 0
    %v1269 = vsel %vm1258, %v28, 0
    %vm1271 = vcmask 1044480
    %v1273 = vsel %vm1271, %v61, 0
    %1275 = vmatprep.subr.mxu0 0.0
    %1276 = vmatpush1.msra.mxu0 0.0
    %1277 = vmatprep.subr.mxu0 0.0
    %1278 = vmatpush1.msra.mxu0 0.0
    %1279 = vmatprep.subr.mxu0 0.0
    %1280 = vmatpush1.msra.mxu0 0.0
    %1281 = vmatprep.subr.mxu0 0.0
    %1282 = vmatpush1.msra.mxu0 0.0
    %1283 = vmatprep.subr.mxu0 0.0
    %1284 = vmatpush1.msra.mxu0 0.0
    %1285 = vmatprep.subr.mxu0 0.0
    %1286 = vmatpush1.msra.mxu0 0.0
    %1287 = vmatprep.subr.mxu0 0.0
    %1288 = vmatpush1.msra.mxu0 0.0
    %1289 = vmatprep.subr.mxu0 0.0
    %1290 = vmatpush1.msra.mxu0 0.0
    %1291 = vmatprep.subr.mxu0 0.0
    %1292 = vmatpush1.msra.mxu0 0.0
    %1293 = vmatprep.subr.mxu0 0.0
    %1294 = vmatpush1.msra.mxu0 0.0
    %1295 = vmatprep.subr.mxu0 0.0
    %1296 = vmatpush1.msra.mxu0 0.0
    %1297 = vmatprep.subr.mxu0 0.0
    %1298 = vmatpush1.msra.mxu0 0.0
    %1299 = vmatprep.subr.mxu0 0.0
    %1300 = vmatpush1.msra.mxu0 0.0
    %1301 = vmatprep.subr.mxu0 0.0
    %1302 = vmatpush1.msra.mxu0 0.0
    %1303 = vmatprep.subr.mxu0 0.0
    %1304 = vmatpush1.msra.mxu0 0.0
    %1305 = vmatprep.subr.mxu0 0.0
    %v1306 = vand.u32 %v1273, 4294901760
    %1307 = vmatpush1.msra.mxu0 %v1306
    %1308 = vmatprep.subr.mxu0 0.0
    %1309 = vmatpush2.msra.mxu0 0.0
    %1310 = vmatprep.subr.mxu0 0.0
    %1311 = vmatpush2.msra.mxu0 0.0
    %1312 = vmatprep.subr.mxu0 0.0
    %1313 = vmatpush2.msra.mxu0 0.0
    %1314 = vmatprep.subr.mxu0 0.0
    %1315 = vmatpush2.msra.mxu0 0.0
    %1316 = vmatprep.subr.mxu0 0.0
    %1317 = vmatpush2.msra.mxu0 0.0
    %1318 = vmatprep.subr.mxu0 0.0
    %1319 = vmatpush2.msra.mxu0 0.0
    %1320 = vmatprep.subr.mxu0 0.0
    %1321 = vmatpush2.msra.mxu0 0.0
    %1322 = vmatprep.subr.mxu0 0.0
    %1323 = vmatpush2.msra.mxu0 0.0
    %1324 = vmatprep.subr.mxu0 0.0
    %1325 = vmatpush2.msra.mxu0 0.0
    %1326 = vmatprep.subr.mxu0 0.0
    %1327 = vmatpush2.msra.mxu0 0.0
    %1328 = vmatprep.subr.mxu0 0.0
    %1329 = vmatpush2.msra.mxu0 0.0
    %1330 = vmatprep.subr.mxu0 0.0
    %1331 = vmatpush2.msra.mxu0 0.0
    %1332 = vmatprep.subr.mxu0 0.0
    %1333 = vmatpush2.msra.mxu0 0.0
    %1334 = vmatprep.subr.mxu0 0.0
    %1335 = vmatpush2.msra.mxu0 0.0
    %1336 = vmatprep.subr.mxu0 0.0
    %1337 = vmatpush2.msra.mxu0 0.0
    %1338 = vmatprep.subr.mxu0 0.0
    %1339 = vmatpush2.msra.mxu0 0.0
    %1340 = vmatprep.mubr.f32.mxu0 0.0
    %v1341 = vand.u32 %v1260, 4294901760
    %v1342 = vsub.f32 %v1260, %v1341
    %v1343 = vand.u32 %v1342, 4294901760
    %v1344 = vsub.f32 %v1342, %v1343
    %v1345 = vand.u32 %v1344, 4294901760
    %1346 = vmatmul.mubr.f32.gmra.mxu0 %v1345
    %v1347 = vpop.f32.mrf.mxu0
    %v1348 = vadd.f32 0.0, %v1347
    %v1349 = vpop.f32.mrf.mxu0
    %1350 = vmatprep.mubr.f32.mxu0 0.0
    %v1351 = vand.u32 %v1263, 4294901760
    %v1352 = vsub.f32 %v1263, %v1351
    %v1353 = vand.u32 %v1352, 4294901760
    %v1354 = vsub.f32 %v1352, %v1353
    %v1355 = vand.u32 %v1354, 4294901760
    %1356 = vmatmul.mubr.f32.gmra.mxu0 %v1355
    %v1357 = vpop.f32.mrf.mxu0
    %v1358 = vadd.f32 0.0, %v1357
    %v1359 = vpop.f32.mrf.mxu0
    %1360 = vmatprep.mubr.f32.mxu0 0.0
    %v1361 = vand.u32 %v1266, 4294901760
    %v1362 = vsub.f32 %v1266, %v1361
    %v1363 = vand.u32 %v1362, 4294901760
    %v1364 = vsub.f32 %v1362, %v1363
    %v1365 = vand.u32 %v1364, 4294901760
    %1366 = vmatmul.mubr.f32.gmra.mxu0 %v1365
    %v1367 = vpop.f32.mrf.mxu0
    %v1368 = vadd.f32 0.0, %v1367
    %v1369 = vpop.f32.mrf.mxu0
    %1370 = vmatprep.mubr.f32.mxu0 0.0
    %v1371 = vand.u32 %v1269, 4294901760
    %v1372 = vsub.f32 %v1269, %v1371
    %v1373 = vand.u32 %v1372, 4294901760
    %v1374 = vsub.f32 %v1372, %v1373
    %v1375 = vand.u32 %v1374, 4294901760
    %1376 = vmatmul.mubr.f32.gmra.mxu0 %v1375
    %v1377 = vpop.f32.mrf.mxu0
    %v1378 = vadd.f32 0.0, %v1377
    %v1379 = vpop.f32.mrf.mxu0
    %1380 = vdwg.mxu0
    %1381 = vmatprep.subr.mxu0 0.0
    %1382 = vmatpush1.msra.mxu0 0.0
    %1383 = vmatprep.subr.mxu0 0.0
    %1384 = vmatpush1.msra.mxu0 0.0
    %1385 = vmatprep.subr.mxu0 0.0
    %1386 = vmatpush1.msra.mxu0 0.0
    %1387 = vmatprep.subr.mxu0 0.0
    %1388 = vmatpush1.msra.mxu0 0.0
    %1389 = vmatprep.subr.mxu0 0.0
    %1390 = vmatpush1.msra.mxu0 0.0
    %1391 = vmatprep.subr.mxu0 0.0
    %1392 = vmatpush1.msra.mxu0 0.0
    %1393 = vmatprep.subr.mxu0 0.0
    %1394 = vmatpush1.msra.mxu0 0.0
    %1395 = vmatprep.subr.mxu0 0.0
    %1396 = vmatpush1.msra.mxu0 0.0
    %1397 = vmatprep.subr.mxu0 0.0
    %1398 = vmatpush1.msra.mxu0 0.0
    %1399 = vmatprep.subr.mxu0 0.0
    %1400 = vmatpush1.msra.mxu0 0.0
    %1401 = vmatprep.subr.mxu0 0.0
    %1402 = vmatpush1.msra.mxu0 0.0
    %1403 = vmatprep.subr.mxu0 0.0
    %1404 = vmatpush1.msra.mxu0 0.0
    %1405 = vmatprep.subr.mxu0 0.0
    %1406 = vmatpush1.msra.mxu0 0.0
    %1407 = vmatprep.subr.mxu0 0.0
    %1408 = vmatpush1.msra.mxu0 0.0
    %1409 = vmatprep.subr.mxu0 0.0
    %1410 = vmatpush1.msra.mxu0 0.0
    %1411 = vmatprep.subr.mxu0 0.0
    %v1412 = vand.u32 %v1273, 4294901760
    %v1413 = vsub.f32 %v1273, %v1412
    %v1414 = vand.u32 %v1413, 4294901760
    %v1415 = vsub.f32 %v1413, %v1414
    %v1416 = vand.u32 %v1415, 4294901760
    %1417 = vmatpush1.msra.mxu0 %v1416
    %1418 = vmatprep.subr.mxu0 0.0
    %1419 = vmatpush2.msra.mxu0 0.0
    %1420 = vmatprep.subr.mxu0 0.0
    %1421 = vmatpush2.msra.mxu0 0.0
    %1422 = vmatprep.subr.mxu0 0.0
    %1423 = vmatpush2.msra.mxu0 0.0
    %1424 = vmatprep.subr.mxu0 0.0
    %1425 = vmatpush2.msra.mxu0 0.0
    %1426 = vmatprep.subr.mxu0 0.0
    %1427 = vmatpush2.msra.mxu0 0.0
    %1428 = vmatprep.subr.mxu0 0.0
    %1429 = vmatpush2.msra.mxu0 0.0
    %1430 = vmatprep.subr.mxu0 0.0
    %1431 = vmatpush2.msra.mxu0 0.0
    %1432 = vmatprep.subr.mxu0 0.0
    %1433 = vmatpush2.msra.mxu0 0.0
    %1434 = vmatprep.subr.mxu0 0.0
    %1435 = vmatpush2.msra.mxu0 0.0
    %1436 = vmatprep.subr.mxu0 0.0
    %1437 = vmatpush2.msra.mxu0 0.0
    %1438 = vmatprep.subr.mxu0 0.0
    %1439 = vmatpush2.msra.mxu0 0.0
    %1440 = vmatprep.subr.mxu0 0.0
    %1441 = vmatpush2.msra.mxu0 0.0
    %1442 = vmatprep.subr.mxu0 0.0
    %1443 = vmatpush2.msra.mxu0 0.0
    %1444 = vmatprep.subr.mxu0 0.0
    %1445 = vmatpush2.msra.mxu0 0.0
    %1446 = vmatprep.subr.mxu0 0.0
    %1447 = vmatpush2.msra.mxu0 0.0
    %1448 = vmatprep.subr.mxu0 0.0
    %1449 = vmatpush2.msra.mxu0 0.0
    %1450 = vmatprep.mubr.f32.mxu0 0.0
    %v1451 = vand.u32 %v1260, 4294901760
    %1452 = vmatmul.mubr.f32.gmra.mxu0 %v1451
    %v1453 = vpop.f32.mrf.mxu0
    %v1454 = vadd.f32 %v1348, %v1453
    %v1455 = vpop.f32.mrf.mxu0
    %1456 = vmatprep.mubr.f32.mxu0 0.0
    %v1457 = vand.u32 %v1263, 4294901760
    %1458 = vmatmul.mubr.f32.gmra.mxu0 %v1457
    %v1459 = vpop.f32.mrf.mxu0
    %v1460 = vadd.f32 %v1358, %v1459
    %v1461 = vpop.f32.mrf.mxu0
    %1462 = vmatprep.mubr.f32.mxu0 0.0
    %v1463 = vand.u32 %v1266, 4294901760
    %1464 = vmatmul.mubr.f32.gmra.mxu0 %v1463
    %v1465 = vpop.f32.mrf.mxu0
    %v1466 = vadd.f32 %v1368, %v1465
    %v1467 = vpop.f32.mrf.mxu0
    %1468 = vmatprep.mubr.f32.mxu0 0.0
    %v1469 = vand.u32 %v1269, 4294901760
    %1470 = vmatmul.mubr.f32.gmra.mxu0 %v1469
    %v1471 = vpop.f32.mrf.mxu0
    %v1472 = vadd.f32 %v1378, %v1471
    %v1473 = vpop.f32.mrf.mxu0
    %1474 = vdwg.mxu0
    %1475 = vmatprep.subr.mxu0 0.0
    %1476 = vmatpush1.msra.mxu0 0.0
    %1477 = vmatprep.subr.mxu0 0.0
    %1478 = vmatpush1.msra.mxu0 0.0
    %1479 = vmatprep.subr.mxu0 0.0
    %1480 = vmatpush1.msra.mxu0 0.0
    %1481 = vmatprep.subr.mxu0 0.0
    %1482 = vmatpush1.msra.mxu0 0.0
    %1483 = vmatprep.subr.mxu0 0.0
    %1484 = vmatpush1.msra.mxu0 0.0
    %1485 = vmatprep.subr.mxu0 0.0
    %1486 = vmatpush1.msra.mxu0 0.0
    %1487 = vmatprep.subr.mxu0 0.0
    %1488 = vmatpush1.msra.mxu0 0.0
    %1489 = vmatprep.subr.mxu0 0.0
    %1490 = vmatpush1.msra.mxu0 0.0
    %1491 = vmatprep.subr.mxu0 0.0
    %1492 = vmatpush1.msra.mxu0 0.0
    %1493 = vmatprep.subr.mxu0 0.0
    %1494 = vmatpush1.msra.mxu0 0.0
    %1495 = vmatprep.subr.mxu0 0.0
    %1496 = vmatpush1.msra.mxu0 0.0
    %1497 = vmatprep.subr.mxu0 0.0
    %1498 = vmatpush1.msra.mxu0 0.0
    %1499 = vmatprep.subr.mxu0 0.0
    %1500 = vmatpush1.msra.mxu0 0.0
    %1501 = vmatprep.subr.mxu0 0.0
    %1502 = vmatpush1.msra.mxu0 0.0
    %1503 = vmatprep.subr.mxu0 0.0
    %1504 = vmatpush1.msra.mxu0 0.0
    %1505 = vmatprep.subr.mxu0 0.0
    %v1506 = vand.u32 %v1273, 4294901760
    %v1507 = vsub.f32 %v1273, %v1506
    %1508 = vmatpush1.msra.mxu0 %v1507
    %1509 = vmatprep.subr.mxu0 0.0
    %1510 = vmatpush2.msra.mxu0 0.0
    %1511 = vmatprep.subr.mxu0 0.0
    %1512 = vmatpush2.msra.mxu0 0.0
    %1513 = vmatprep.subr.mxu0 0.0
    %1514 = vmatpush2.msra.mxu0 0.0
    %1515 = vmatprep.subr.mxu0 0.0
    %1516 = vmatpush2.msra.mxu0 0.0
    %1517 = vmatprep.subr.mxu0 0.0
    %1518 = vmatpush2.msra.mxu0 0.0
    %1519 = vmatprep.subr.mxu0 0.0
    %1520 = vmatpush2.msra.mxu0 0.0
    %1521 = vmatprep.subr.mxu0 0.0
    %1522 = vmatpush2.msra.mxu0 0.0
    %1523 = vmatprep.subr.mxu0 0.0
    %1524 = vmatpush2.msra.mxu0 0.0
    %1525 = vmatprep.subr.mxu0 0.0
    %1526 = vmatpush2.msra.mxu0 0.0
    %1527 = vmatprep.subr.mxu0 0.0
    %1528 = vmatpush2.msra.mxu0 0.0
    %1529 = vmatprep.subr.mxu0 0.0
    %1530 = vmatpush2.msra.mxu0 0.0
    %1531 = vmatprep.subr.mxu0 0.0
    %1532 = vmatpush2.msra.mxu0 0.0
    %1533 = vmatprep.subr.mxu0 0.0
    %1534 = vmatpush2.msra.mxu0 0.0
    %1535 = vmatprep.subr.mxu0 0.0
    %1536 = vmatpush2.msra.mxu0 0.0
    %1537 = vmatprep.subr.mxu0 0.0
    %1538 = vmatpush2.msra.mxu0 0.0
    %1539 = vmatprep.subr.mxu0 0.0
    %1540 = vmatpush2.msra.mxu0 0.0
    %1541 = vmatprep.mubr.f32.mxu0 0.0
    %v1542 = vand.u32 %v1260, 4294901760
    %v1543 = vsub.f32 %v1260, %v1542
    %1544 = vmatmul.mubr.f32.gmra.mxu0 %v1543
    %v1545 = vpop.f32.mrf.mxu0
    %v1546 = vadd.f32 %v1454, %v1545
    %v1547 = vpop.f32.mrf.mxu0
    %1548 = vmatprep.mubr.f32.mxu0 0.0
    %v1549 = vand.u32 %v1263, 4294901760
    %v1550 = vsub.f32 %v1263, %v1549
    %1551 = vmatmul.mubr.f32.gmra.mxu0 %v1550
    %v1552 = vpop.f32.mrf.mxu0
    %v1553 = vadd.f32 %v1460, %v1552
    %v1554 = vpop.f32.mrf.mxu0
    %1555 = vmatprep.mubr.f32.mxu0 0.0
    %v1556 = vand.u32 %v1266, 4294901760
    %v1557 = vsub.f32 %v1266, %v1556
    %1558 = vmatmul.mubr.f32.gmra.mxu0 %v1557
    %v1559 = vpop.f32.mrf.mxu0
    %v1560 = vadd.f32 %v1466, %v1559
    %v1561 = vpop.f32.mrf.mxu0
    %1562 = vmatprep.mubr.f32.mxu0 0.0
    %v1563 = vand.u32 %v1269, 4294901760
    %v1564 = vsub.f32 %v1269, %v1563
    %1565 = vmatmul.mubr.f32.gmra.mxu0 %v1564
    %v1566 = vpop.f32.mrf.mxu0
    %v1567 = vadd.f32 %v1472, %v1566
    %v1568 = vpop.f32.mrf.mxu0
    %1569 = vdwg.mxu0
    %1570 = vmatprep.subr.mxu0 0.0
    %1571 = vmatpush1.msra.mxu0 0.0
    %1572 = vmatprep.subr.mxu0 0.0
    %1573 = vmatpush1.msra.mxu0 0.0
    %1574 = vmatprep.subr.mxu0 0.0
    %1575 = vmatpush1.msra.mxu0 0.0
    %1576 = vmatprep.subr.mxu0 0.0
    %1577 = vmatpush1.msra.mxu0 0.0
    %1578 = vmatprep.subr.mxu0 0.0
    %1579 = vmatpush1.msra.mxu0 0.0
    %1580 = vmatprep.subr.mxu0 0.0
    %1581 = vmatpush1.msra.mxu0 0.0
    %1582 = vmatprep.subr.mxu0 0.0
    %1583 = vmatpush1.msra.mxu0 0.0
    %1584 = vmatprep.subr.mxu0 0.0
    %1585 = vmatpush1.msra.mxu0 0.0
    %1586 = vmatprep.subr.mxu0 0.0
    %1587 = vmatpush1.msra.mxu0 0.0
    %1588 = vmatprep.subr.mxu0 0.0
    %1589 = vmatpush1.msra.mxu0 0.0
    %1590 = vmatprep.subr.mxu0 0.0
    %1591 = vmatpush1.msra.mxu0 0.0
    %1592 = vmatprep.subr.mxu0 0.0
    %1593 = vmatpush1.msra.mxu0 0.0
    %1594 = vmatprep.subr.mxu0 0.0
    %1595 = vmatpush1.msra.mxu0 0.0
    %1596 = vmatprep.subr.mxu0 0.0
    %1597 = vmatpush1.msra.mxu0 0.0
    %1598 = vmatprep.subr.mxu0 0.0
    %1599 = vmatpush1.msra.mxu0 0.0
    %1600 = vmatprep.subr.mxu0 0.0
    %v1601 = vand.u32 %v1273, 4294901760
    %1602 = vmatpush1.msra.mxu0 %v1601
    %1603 = vmatprep.subr.mxu0 0.0
    %1604 = vmatpush2.msra.mxu0 0.0
    %1605 = vmatprep.subr.mxu0 0.0
    %1606 = vmatpush2.msra.mxu0 0.0
    %1607 = vmatprep.subr.mxu0 0.0
    %1608 = vmatpush2.msra.mxu0 0.0
    %1609 = vmatprep.subr.mxu0 0.0
    %1610 = vmatpush2.msra.mxu0 0.0
    %1611 = vmatprep.subr.mxu0 0.0
    %1612 = vmatpush2.msra.mxu0 0.0
    %1613 = vmatprep.subr.mxu0 0.0
    %1614 = vmatpush2.msra.mxu0 0.0
    %1615 = vmatprep.subr.mxu0 0.0
    %1616 = vmatpush2.msra.mxu0 0.0
    %1617 = vmatprep.subr.mxu0 0.0
    %1618 = vmatpush2.msra.mxu0 0.0
    %1619 = vmatprep.subr.mxu0 0.0
    %1620 = vmatpush2.msra.mxu0 0.0
    %1621 = vmatprep.subr.mxu0 0.0
    %1622 = vmatpush2.msra.mxu0 0.0
    %1623 = vmatprep.subr.mxu0 0.0
    %1624 = vmatpush2.msra.mxu0 0.0
    %1625 = vmatprep.subr.mxu0 0.0
    %1626 = vmatpush2.msra.mxu0 0.0
    %1627 = vmatprep.subr.mxu0 0.0
    %1628 = vmatpush2.msra.mxu0 0.0
    %1629 = vmatprep.subr.mxu0 0.0
    %1630 = vmatpush2.msra.mxu0 0.0
    %1631 = vmatprep.subr.mxu0 0.0
    %1632 = vmatpush2.msra.mxu0 0.0
    %1633 = vmatprep.subr.mxu0 0.0
    %1634 = vmatpush2.msra.mxu0 0.0
    %1635 = vmatprep.mubr.f32.mxu0 0.0
    %v1636 = vand.u32 %v1260, 4294901760
    %v1637 = vsub.f32 %v1260, %v1636
    %v1638 = vand.u32 %v1637, 4294901760
    %1639 = vmatmul.mubr.f32.gmra.mxu0 %v1638
    %v1640 = vpop.f32.mrf.mxu0
    %v1641 = vadd.f32 %v1546, %v1640
    %v1642 = vpop.f32.mrf.mxu0
    %1643 = vmatprep.mubr.f32.mxu0 0.0
    %v1644 = vand.u32 %v1263, 4294901760
    %v1645 = vsub.f32 %v1263, %v1644
    %v1646 = vand.u32 %v1645, 4294901760
    %1647 = vmatmul.mubr.f32.gmra.mxu0 %v1646
    %v1648 = vpop.f32.mrf.mxu0
    %v1649 = vadd.f32 %v1553, %v1648
    %v1650 = vpop.f32.mrf.mxu0
    %1651 = vmatprep.mubr.f32.mxu0 0.0
    %v1652 = vand.u32 %v1266, 4294901760
    %v1653 = vsub.f32 %v1266, %v1652
    %v1654 = vand.u32 %v1653, 4294901760
    %1655 = vmatmul.mubr.f32.gmra.mxu0 %v1654
    %v1656 = vpop.f32.mrf.mxu0
    %v1657 = vadd.f32 %v1560, %v1656
    %v1658 = vpop.f32.mrf.mxu0
    %1659 = vmatprep.mubr.f32.mxu0 0.0
    %v1660 = vand.u32 %v1269, 4294901760
    %v1661 = vsub.f32 %v1269, %v1660
    %v1662 = vand.u32 %v1661, 4294901760
    %1663 = vmatmul.mubr.f32.gmra.mxu0 %v1662
    %v1664 = vpop.f32.mrf.mxu0
    %v1665 = vadd.f32 %v1567, %v1664
    %v1666 = vpop.f32.mrf.mxu0
    %1667 = vdwg.mxu0
    %1668 = vmatprep.subr.mxu0 0.0
    %1669 = vmatpush1.msra.mxu0 0.0
    %1670 = vmatprep.subr.mxu0 0.0
    %1671 = vmatpush1.msra.mxu0 0.0
    %1672 = vmatprep.subr.mxu0 0.0
    %1673 = vmatpush1.msra.mxu0 0.0
    %1674 = vmatprep.subr.mxu0 0.0
    %1675 = vmatpush1.msra.mxu0 0.0
    %1676 = vmatprep.subr.mxu0 0.0
    %1677 = vmatpush1.msra.mxu0 0.0
    %1678 = vmatprep.subr.mxu0 0.0
    %1679 = vmatpush1.msra.mxu0 0.0
    %1680 = vmatprep.subr.mxu0 0.0
    %1681 = vmatpush1.msra.mxu0 0.0
    %1682 = vmatprep.subr.mxu0 0.0
    %1683 = vmatpush1.msra.mxu0 0.0
    %1684 = vmatprep.subr.mxu0 0.0
    %1685 = vmatpush1.msra.mxu0 0.0
    %1686 = vmatprep.subr.mxu0 0.0
    %1687 = vmatpush1.msra.mxu0 0.0
    %1688 = vmatprep.subr.mxu0 0.0
    %1689 = vmatpush1.msra.mxu0 0.0
    %1690 = vmatprep.subr.mxu0 0.0
    %1691 = vmatpush1.msra.mxu0 0.0
    %1692 = vmatprep.subr.mxu0 0.0
    %1693 = vmatpush1.msra.mxu0 0.0
    %1694 = vmatprep.subr.mxu0 0.0
    %1695 = vmatpush1.msra.mxu0 0.0
    %1696 = vmatprep.subr.mxu0 0.0
    %1697 = vmatpush1.msra.mxu0 0.0
    %1698 = vmatprep.subr.mxu0 0.0
    %v1699 = vand.u32 %v1273, 4294901760
    %v1700 = vsub.f32 %v1273, %v1699
    %v1701 = vand.u32 %v1700, 4294901760
    %1702 = vmatpush1.msra.mxu0 %v1701
    %1703 = vmatprep.subr.mxu0 0.0
    %1704 = vmatpush2.msra.mxu0 0.0
    %1705 = vmatprep.subr.mxu0 0.0
    %1706 = vmatpush2.msra.mxu0 0.0
    %1707 = vmatprep.subr.mxu0 0.0
    %1708 = vmatpush2.msra.mxu0 0.0
    %1709 = vmatprep.subr.mxu0 0.0
    %1710 = vmatpush2.msra.mxu0 0.0
    %1711 = vmatprep.subr.mxu0 0.0
    %1712 = vmatpush2.msra.mxu0 0.0
    %1713 = vmatprep.subr.mxu0 0.0
    %1714 = vmatpush2.msra.mxu0 0.0
    %1715 = vmatprep.subr.mxu0 0.0
    %1716 = vmatpush2.msra.mxu0 0.0
    %1717 = vmatprep.subr.mxu0 0.0
    %1718 = vmatpush2.msra.mxu0 0.0
    %1719 = vmatprep.subr.mxu0 0.0
    %1720 = vmatpush2.msra.mxu0 0.0
    %1721 = vmatprep.subr.mxu0 0.0
    %1722 = vmatpush2.msra.mxu0 0.0
    %1723 = vmatprep.subr.mxu0 0.0
    %1724 = vmatpush2.msra.mxu0 0.0
    %1725 = vmatprep.subr.mxu0 0.0
    %1726 = vmatpush2.msra.mxu0 0.0
    %1727 = vmatprep.subr.mxu0 0.0
    %1728 = vmatpush2.msra.mxu0 0.0
    %1729 = vmatprep.subr.mxu0 0.0
    %1730 = vmatpush2.msra.mxu0 0.0
    %1731 = vmatprep.subr.mxu0 0.0
    %1732 = vmatpush2.msra.mxu0 0.0
    %1733 = vmatprep.subr.mxu0 0.0
    %1734 = vmatpush2.msra.mxu0 0.0
    %1735 = vmatprep.mubr.f32.mxu0 0.0
    %v1736 = vand.u32 %v1260, 4294901760
    %1737 = vmatmul.mubr.f32.gmra.mxu0 %v1736
    %v1738 = vpop.f32.mrf.mxu0
    %v1739 = vadd.f32 %v1641, %v1738
    %v1740 = vpop.f32.mrf.mxu0
    %1741 = vmatprep.mubr.f32.mxu0 0.0
    %v1742 = vand.u32 %v1263, 4294901760
    %1743 = vmatmul.mubr.f32.gmra.mxu0 %v1742
    %v1744 = vpop.f32.mrf.mxu0
    %v1745 = vadd.f32 %v1649, %v1744
    %v1746 = vpop.f32.mrf.mxu0
    %1747 = vmatprep.mubr.f32.mxu0 0.0
    %v1748 = vand.u32 %v1266, 4294901760
    %1749 = vmatmul.mubr.f32.gmra.mxu0 %v1748
    %v1750 = vpop.f32.mrf.mxu0
    %v1751 = vadd.f32 %v1657, %v1750
    %v1752 = vpop.f32.mrf.mxu0
    %1753 = vmatprep.mubr.f32.mxu0 0.0
    %v1754 = vand.u32 %v1269, 4294901760
    %1755 = vmatmul.mubr.f32.gmra.mxu0 %v1754
    %v1756 = vpop.f32.mrf.mxu0
    %v1757 = vadd.f32 %v1665, %v1756
    %v1758 = vpop.f32.mrf.mxu0
    %1759 = vdwg.mxu0
    %1760 = vmatprep.subr.mxu0 0.0
    %1761 = vmatpush1.msra.mxu0 0.0
    %1762 = vmatprep.subr.mxu0 0.0
    %1763 = vmatpush1.msra.mxu0 0.0
    %1764 = vmatprep.subr.mxu0 0.0
    %1765 = vmatpush1.msra.mxu0 0.0
    %1766 = vmatprep.subr.mxu0 0.0
    %1767 = vmatpush1.msra.mxu0 0.0
    %1768 = vmatprep.subr.mxu0 0.0
    %1769 = vmatpush1.msra.mxu0 0.0
    %1770 = vmatprep.subr.mxu0 0.0
    %1771 = vmatpush1.msra.mxu0 0.0
    %1772 = vmatprep.subr.mxu0 0.0
    %1773 = vmatpush1.msra.mxu0 0.0
    %1774 = vmatprep.subr.mxu0 0.0
    %1775 = vmatpush1.msra.mxu0 0.0
    %1776 = vmatprep.subr.mxu0 0.0
    %1777 = vmatpush1.msra.mxu0 0.0
    %1778 = vmatprep.subr.mxu0 0.0
    %1779 = vmatpush1.msra.mxu0 0.0
    %1780 = vmatprep.subr.mxu0 0.0
    %1781 = vmatpush1.msra.mxu0 0.0
    %1782 = vmatprep.subr.mxu0 0.0
    %1783 = vmatpush1.msra.mxu0 0.0
    %1784 = vmatprep.subr.mxu0 0.0
    %1785 = vmatpush1.msra.mxu0 0.0
    %1786 = vmatprep.subr.mxu0 0.0
    %1787 = vmatpush1.msra.mxu0 0.0
    %1788 = vmatprep.subr.mxu0 0.0
    %1789 = vmatpush1.msra.mxu0 0.0
    %1790 = vmatprep.subr.mxu0 0.0
    %v1791 = vand.u32 %v1273, 4294901760
    %1792 = vmatpush1.msra.mxu0 %v1791
    %1793 = vmatprep.subr.mxu0 0.0
    %1794 = vmatpush2.msra.mxu0 0.0
    %1795 = vmatprep.subr.mxu0 0.0
    %1796 = vmatpush2.msra.mxu0 0.0
    %1797 = vmatprep.subr.mxu0 0.0
    %1798 = vmatpush2.msra.mxu0 0.0
    %1799 = vmatprep.subr.mxu0 0.0
    %1800 = vmatpush2.msra.mxu0 0.0
    %1801 = vmatprep.subr.mxu0 0.0
    %1802 = vmatpush2.msra.mxu0 0.0
    %1803 = vmatprep.subr.mxu0 0.0
    %1804 = vmatpush2.msra.mxu0 0.0
    %1805 = vmatprep.subr.mxu0 0.0
    %1806 = vmatpush2.msra.mxu0 0.0
    %1807 = vmatprep.subr.mxu0 0.0
    %1808 = vmatpush2.msra.mxu0 0.0
    %1809 = vmatprep.subr.mxu0 0.0
    %1810 = vmatpush2.msra.mxu0 0.0
    %1811 = vmatprep.subr.mxu0 0.0
    %1812 = vmatpush2.msra.mxu0 0.0
    %1813 = vmatprep.subr.mxu0 0.0
    %1814 = vmatpush2.msra.mxu0 0.0
    %1815 = vmatprep.subr.mxu0 0.0
    %1816 = vmatpush2.msra.mxu0 0.0
    %1817 = vmatprep.subr.mxu0 0.0
    %1818 = vmatpush2.msra.mxu0 0.0
    %1819 = vmatprep.subr.mxu0 0.0
    %1820 = vmatpush2.msra.mxu0 0.0
    %1821 = vmatprep.subr.mxu0 0.0
    %1822 = vmatpush2.msra.mxu0 0.0
    %1823 = vmatprep.subr.mxu0 0.0
    %1824 = vmatpush2.msra.mxu0 0.0
    %1825 = vmatprep.mubr.f32.mxu0 0.0
    %v1826 = vand.u32 %v1260, 4294901760
    %1827 = vmatmul.mubr.f32.gmra.mxu0 %v1826
    %v1828 = vpop.f32.mrf.mxu0
    %v1829 = vadd.f32 %v1739, %v1828
    %v1830 = vpop.f32.mrf.mxu0
    %1831 = vmatprep.mubr.f32.mxu0 0.0
    %v1832 = vand.u32 %v1263, 4294901760
    %1833 = vmatmul.mubr.f32.gmra.mxu0 %v1832
    %v1834 = vpop.f32.mrf.mxu0
    %v1835 = vadd.f32 %v1745, %v1834
    %v1836 = vpop.f32.mrf.mxu0
    %1837 = vmatprep.mubr.f32.mxu0 0.0
    %v1838 = vand.u32 %v1266, 4294901760
    %1839 = vmatmul.mubr.f32.gmra.mxu0 %v1838
    %v1840 = vpop.f32.mrf.mxu0
    %v1841 = vadd.f32 %v1751, %v1840
    %v1842 = vpop.f32.mrf.mxu0
    %1843 = vmatprep.mubr.f32.mxu0 0.0
    %v1844 = vand.u32 %v1269, 4294901760
    %1845 = vmatmul.mubr.f32.gmra.mxu0 %v1844
    %v1846 = vpop.f32.mrf.mxu0
    %v1847 = vadd.f32 %v1757, %v1846
    %v1848 = vpop.f32.mrf.mxu0
    %1849 = vdwg.mxu0
    %v1850 = vand.u32 2147483647, %v646
    %v1851 = vand.u32 2147483647, %v652
    %v1852 = vand.u32 2147483647, %v658
    %v1853 = vand.u32 2147483647, %v664
    %v1854 = vadd.f32 %v1850, %v1851
    %v1855 = vadd.f32 %v1854, %v1852
    %v1856 = vadd.f32 %v1855, %v1853
    %v1857 = vrot.slane %v1856, 4
    %v1858 = vadd.f32 %v1856, %v1857
    %v1859 = vrot.slane %v1858, 2
    %v1860 = vadd.f32 %v1858, %v1859
    %v1861 = vrot.slane %v1860, 1
    %v1862 = vadd.f32 %v1860, %v1861
    %v1863 = vmax.f32 %v1862, 1e-12
    %v1864 = vand.u32 2147483647, %v1237
    %v1865 = vand.u32 2147483647, %v1243
    %v1866 = vand.u32 2147483647, %v1249
    %v1867 = vand.u32 2147483647, %v1255
    %v1868 = vadd.f32 %v1864, %v1865
    %v1869 = vadd.f32 %v1868, %v1866
    %v1870 = vadd.f32 %v1869, %v1867
    %v1871 = vrot.slane %v1870, 4
    %v1872 = vadd.f32 %v1870, %v1871
    %v1873 = vrot.slane %v1872, 2
    %v1874 = vadd.f32 %v1872, %v1873
    %v1875 = vrot.slane %v1874, 1
    %v1876 = vadd.f32 %v1874, %v1875
    %v1877 = vmax.f32 %v1876, 1e-12
    %v1878 = vrcp.pop %v1863
    %v1879 = vrcp.pop %v1877
    %v1880 = vmul.f32 %v646, %v1878
    %v1881 = vmul.f32 %v652, %v1878
    %v1882 = vmul.f32 %v658, %v1878
    %v1883 = vmul.f32 %v664, %v1878
    %v1884 = vadd.f32 %v1880, %v1829
    %v1885 = vadd.f32 %v1881, %v1835
    %v1886 = vadd.f32 %v1882, %v1841
    %v1887 = vadd.f32 %v1883, %v1847
    %v1888 = vmul.f32 %v1237, %v1879
    %v1889 = vmul.f32 %v1243, %v1879
    %v1890 = vmul.f32 %v1249, %v1879
    %v1891 = vmul.f32 %v1255, %v1879
    %v1892 = vsub.f32 %v1884, %v1888
    %v1893 = vsub.f32 %v1885, %v1889
    %v1894 = vsub.f32 %v1886, %v1890
    %v1895 = vsub.f32 %v1887, %v1891
    %v1896 = vand.u32 2147483647, %v1892
    %v1897 = vand.u32 2147483647, %v1893
    %v1898 = vand.u32 2147483647, %v1894
    %v1899 = vand.u32 2147483647, %v1895
    %v1900 = vadd.f32 %v1896, %v1897
    %v1901 = vadd.f32 %v1900, %v1898
    %v1902 = vadd.f32 %v1901, %v1899
    %v1903 = vrot.slane %v1902, 4
    %v1904 = vadd.f32 %v1902, %v1903
    %v1905 = vrot.slane %v1904, 2
    %v1906 = vadd.f32 %v1904, %v1905
    %v1907 = vrot.slane %v1906, 1
    %v1908 = vadd.f32 %v1906, %v1907
    %v1909 = vsub.f32 0.0, %v1908
    %1910 = vst [vmem:[#allocation2] sm:$0x1] %v1909
    // Predicated region
    $region22: #{tpu_custom_call.1} parent=1 // pred_check
      _
    $region23: #{tpu_custom_call.1} parent=1 // pred_check_branch
      %1912 = sbr.rel (0) target = $region25
    $region24: #{tpu_custom_call.1} parent=1 // pred_region
      %s1914 = ssub.s32 16, 16
      %1915 = vsyncadd [#allocation3], %s1914
      %s1917 = sshll.u32 [#allocation2], 4
      %s1918 = int_to_ptr.vmem [resolvable:$true] %s1917
      %1920 = dma.vmem_to_hbm [thread:$0]  %s1918, 16, %s5, [#allocation3]
    $region25: #{tpu_custom_call.1} parent=1 // pred_fallthru
      _
    // Predicated region
    $region26: #{tpu_custom_call.1} parent=1 // pred_check
      _
    $region27: #{tpu_custom_call.1} parent=1 // pred_check_branch
      %1922 = sbr.rel (0) target = $region29
    $region28: #{tpu_custom_call.1} parent=1 // pred_region
      %1923 = dma.done [#allocation3], 16
    $region29: #{tpu_custom_call.1} parent=1 // pred_fallthru
      _
    %1924 = vsyncpa [#allocation3], 1

</llo_original>
